<compile_context>
chip_gen: v7x
topology: tpu7x:2x2x1
jax: 0.10.0
libtpu: 0.0.40
codegen_flags: <defaults>
</compile_context>

<pallas_src>
import functools

import numpy as np

import jax
import jax.numpy as jnp
from jax import lax
from jax.experimental import pallas as pl
from jax.experimental.pallas import tpu as pltpu

# ----------------------------- configuration -------------------------------
B = 2          # batch
S = 8          # sequence length
D = 32         # model dim
DFF = 64       # feed-forward dim
PAD_IDX = 0    # src_pad_idx == trg_pad_idx

N_QUE = 64     # question vocab
N_ANS = 4      # answer vocab
N_PART = 8     # part vocab
N_ELA = 16     # elapsed-time bucket vocab


# --------------------------- fused Pallas kernel ----------------------------
def _seq2seq_kernel(src_row_ref, ids_ref, sbias_ref,
                    emb_que_ref, emb_ans_ref, emb_part_ref, emb_ela_ref,
                    wq_ref, wk_ref, wv_ref, wo_ref, w1_ref, w2_ref,
                    out_ref, *, batch, seq, pad_idx, scale):
    """Fused embed + mask + enc_self + dec_self + dec_cross forward.

    src_row_ref : (1, B*S)    int32  src_que ids (runtime pad test on keys)
    ids_ref     : (B*S, 8)    int32  columns: [s_que, s_ans, s_part, s_ela,
                                                t_que, t_part, t_ela, dup]
    sbias_ref   : (B*S, B*S)  f32    trace-time static bias (batch & causal)
    emb_*_ref   : (vocab, D)  f32    embedding tables
    wq/wk/wv/wo : (3, D, D)   bf16   [enc_self, dec_self, dec_cross] weights
    w1          : (3, D, DFF) bf16
    w2          : (3, DFF, D) bf16
    out_ref     : (B*S, D)    f32
    """
    bs = batch * seq

    # ---- fused embedding gathers: one-hot (B*S, vocab) @ (vocab, D) --------
    def gather(col, table_ref):
        ids_col = ids_ref[:, col:col + 1]                       # (bs, 1) int32
        vocab = table_ref.shape[0]
        onehot = (ids_col == lax.broadcasted_iota(jnp.int32, (bs, vocab), 1)
                  ).astype(jnp.float32)
        return jnp.dot(onehot, table_ref[...],
                       preferred_element_type=jnp.float32)       # (bs, D) f32

    x_src = (gather(0, emb_que_ref) + gather(1, emb_ans_ref)
             + gather(2, emb_part_ref) + gather(3, emb_ela_ref))
    x_trg = (gather(4, emb_que_ref) + gather(5, emb_part_ref)
             + gather(6, emb_ela_ref))

    # ---- additive attention bias over flattened (B*S, B*S) scores ----------
    # static part (same batch & causal) comes precomputed in sbias_ref;
    # only the runtime key-padding test (src != pad) is evaluated here.
    # NOTE: both decoder masks are derived from *src* padding, exactly like the
    # reference Seq2Seq.make_src_mask / make_trg_src_mask. If every allowed key
    # of a query row is padded the softmax degenerates (same as the reference's
    # masked_fill(-inf) behaviour) -- known edge case, semantics preserved.
    not_pad = src_row_ref[...] != pad_idx                        # (1, bs)
    bias = sbias_ref[...] + jnp.where(not_pad, 0.0, -1e30)       # (bs, bs) f32

    def block(xq, xkv, layer):
        """Masked attention + residual + ReLU FFN + residual for one block.

        bf16 only at MXU dot boundaries; softmax / residual math stays f32.
        """
        xq_b = xq.astype(jnp.bfloat16)
        xkv_b = xkv.astype(jnp.bfloat16)
        q = jnp.dot(xq_b, wq_ref[layer], preferred_element_type=jnp.float32)
        k = jnp.dot(xkv_b, wk_ref[layer], preferred_element_type=jnp.float32)
        v = jnp.dot(xkv_b, wv_ref[layer], preferred_element_type=jnp.float32)

        # q @ k^T without materializing a transpose (contract on last dims).
        scores = lax.dot_general(
            q.astype(jnp.bfloat16), k.astype(jnp.bfloat16),
            dimension_numbers=(((1,), (1,)), ((), ())),
            preferred_element_type=jnp.float32) * scale + bias
        smax = jnp.max(scores, axis=-1, keepdims=True)
        p = jnp.exp(scores - smax)
        denom = jnp.sum(p, axis=-1, keepdims=True)
        p = p / denom                                            # exact softmax
        attn = jnp.dot(p.astype(jnp.bfloat16), v.astype(jnp.bfloat16),
                       preferred_element_type=jnp.float32)       # (bs, D)

        h = jnp.dot(attn.astype(jnp.bfloat16), wo_ref[layer],
                    preferred_element_type=jnp.float32) + xq
        f = jnp.maximum(
            jnp.dot(h.astype(jnp.bfloat16), w1_ref[layer],
                    preferred_element_type=jnp.float32), 0.0)
        return jnp.dot(f.astype(jnp.bfloat16), w2_ref[layer],
                       preferred_element_type=jnp.float32) + h

    memory = block(x_src, x_src, 0)            # encoder self-attention
    trg_h = block(x_trg, x_trg, 1)             # decoder self-attention
    # TODO(synk): output store stays (B*S, D)=(16,32); packing to a lane-dense
    # (4,128) slab needs a minor-dim reshape whose Mosaic lowering is not
    # guaranteed at this shape, and the 2 KB masked store is negligible here.
    out_ref[...] = block(trg_h, memory, 2)     # decoder cross-attention


# --------------------------- parameter setup --------------------------------
def init_params(key):
    keys = jax.random.split(key, 10)

    def w(k, shape):
        return (0.05 * jax.random.normal(k, shape, jnp.float32)
                ).astype(jnp.bfloat16)

    return {
        "emb_que": 0.02 * jax.random.normal(keys[0], (N_QUE, D), jnp.float32),
        "emb_ans": 0.02 * jax.random.normal(keys[1], (N_ANS, D), jnp.float32),
        "emb_part": 0.02 * jax.random.normal(keys[2], (N_PART, D), jnp.float32),
        "emb_ela": 0.02 * jax.random.normal(keys[3], (N_ELA, D), jnp.float32),
        # 3 blocks stacked along dim 0: [enc_self, dec_self, dec_cross].
        # Stored bf16; consumed only at MXU dot boundaries inside the kernel.
        "wq": w(keys[4], (3, D, D)),
        "wk": w(keys[5], (3, D, D)),
        "wv": w(keys[6], (3, D, D)),
        "wo": w(keys[7], (3, D, D)),
        "w1": w(keys[8], (3, D, DFF)),
        "w2": w(keys[9], (3, DFF, D)),
    }


# ------------------------------ forward --------------------------------------
def seq2seq_forward(params, src_que, src_ans, src_part, src_ela,
                    trg_que, trg_part, trg_ela):
    b, s = src_que.shape
    d = params["emb_que"].shape[1]
    bs = b * s

    # All 7 id streams packed into one (B*S, 8) int32 operand (last column is a
    # duplicate of src_que, just padding the column count to 8).
    flat = lambda a: a.reshape(bs).astype(jnp.int32)
    ids = jnp.stack([flat(src_que), flat(src_ans), flat(src_part),
                     flat(src_ela), flat(trg_que), flat(trg_part),
                     flat(trg_ela), flat(src_que)], axis=1)      # (bs, 8)
    src_row = src_que.reshape(1, bs).astype(jnp.int32)           # (1, bs)

    # Static (trace-time) part of the mask over flattened (B*S, B*S) scores:
    # allowed[b*S+i, b'*S+j] needs (b == b') & (j <= i); the runtime pad test
    # is added inside the kernel.  Built with NumPy -> baked constant.
    idx = np.arange(bs)
    same_batch = (idx[:, None] // s) == (idx[None, :] // s)
    causal = (idx[None, :] % s) <= (idx[:, None] % s)
    static_bias = np.where(same_batch & causal, 0.0, -1e30).astype(np.float32)

    kernel = functools.partial(
        _seq2seq_kernel, batch=b, seq=s, pad_idx=PAD_IDX,
        scale=1.0 / float(d) ** 0.5)

    vmem = pl.BlockSpec(memory_space=pltpu.MemorySpace.VMEM)
    # TODO(synk): for production batch sizes, fold more sequences into the
    # flattened M dimension and add a leading "parallel" grid axis
    # (dimension_semantics) so v7x shards across both TensorCores; at B*S=16 a
    # single grid-less call with everything resident in VMEM is optimal.
    out = pl.pallas_call(
        kernel,
        out_shape=jax.ShapeDtypeStruct((bs, d), jnp.float32),
        in_specs=[vmem] * 13,
        out_specs=vmem,
    )(src_row, ids, static_bias,
      params["emb_que"], params["emb_ans"], params["emb_part"], params["emb_ela"],
      params["wq"], params["wk"], params["wv"],
      params["wo"], params["w1"], params["w2"])

    return out.reshape(b, s, d)


# -------------------------------- main ----------------------------------------
if __name__ == "__main__":
    key = jax.random.PRNGKey(0)
    pkey, k1, k2, k3, k4, k5, k6, k7 = jax.random.split(key, 8)

    params = init_params(pkey)

    # Token ids; force one explicit pad so the pad mask is exercised.
    src_que = jax.random.randint(k1, (B, S), 0, N_QUE, dtype=jnp.int32)
    src_que = src_que.at[0, S - 1].set(PAD_IDX)
    src_ans = jax.random.randint(k2, (B, S), 0, N_ANS, dtype=jnp.int32)
    src_part = jax.random.randint(k3, (B, S), 0, N_PART, dtype=jnp.int32)
    src_ela = jax.random.randint(k4, (B, S), 0, N_ELA, dtype=jnp.int32)
    trg_que = jax.random.randint(k5, (B, S), 0, N_QUE, dtype=jnp.int32)
    trg_part = jax.random.randint(k6, (B, S), 0, N_PART, dtype=jnp.int32)
    trg_ela = jax.random.randint(k7, (B, S), 0, N_ELA, dtype=jnp.int32)

    fwd = jax.jit(seq2seq_forward)
    out = fwd(params, src_que, src_ans, src_part, src_ela,
              trg_que, trg_part, trg_ela)
    out = jax.block_until_ready(out)

    assert out.shape == (B, S, D), out.shape
    assert out.dtype == jnp.float32
    assert bool(jnp.all(jnp.isfinite(out)))
    print("KERNEL_OK")
</pallas_src>

<mosaic_0001>
module attributes {stable_mosaic.version = 11 : i64} {
  func.func @_seq2seq_kernel(%arg0: memref<1x16xi32, #tpu.memory_space<vmem>>, %arg1: memref<16x8xi32, #tpu.memory_space<vmem>>, %arg2: memref<16x16xf32, #tpu.memory_space<vmem>>, %arg3: memref<64x32xf32, #tpu.memory_space<vmem>>, %arg4: memref<4x32xf32, #tpu.memory_space<vmem>>, %arg5: memref<8x32xf32, #tpu.memory_space<vmem>>, %arg6: memref<16x32xf32, #tpu.memory_space<vmem>>, %arg7: memref<3x32x32xbf16, #tpu.memory_space<vmem>>, %arg8: memref<3x32x32xbf16, #tpu.memory_space<vmem>>, %arg9: memref<3x32x32xbf16, #tpu.memory_space<vmem>>, %arg10: memref<3x32x32xbf16, #tpu.memory_space<vmem>>, %arg11: memref<3x32x64xbf16, #tpu.memory_space<vmem>>, %arg12: memref<3x64x32xbf16, #tpu.memory_space<vmem>>, %arg13: memref<16x32xf32, #tpu.memory_space<vmem>>) attributes {dimension_semantics = [], scalar_prefetch = 0 : i64, scratch_operands = 0 : i64, tpu.core_type = #tpu.core_type<tc>} {
    %c0 = arith.constant 0 : index
    %c0_0 = arith.constant 0 : index
    %0 = vector.load %arg1[%c0, %c0_0] : memref<16x8xi32, #tpu.memory_space<vmem>>, vector<16x1xi32>
    %1 = tpu.iota {dimensions = array<i32: 1>} : vector<16x64xi32>
    %2 = vector.broadcast %0 : vector<16x1xi32> to vector<16x64xi32>
    %3 = arith.cmpi eq, %2, %1 : vector<16x64xi32>
    %4 = arith.extui %3 : vector<16x64xi1> to vector<16x64xi32>
    %5 = arith.sitofp %4 : vector<16x64xi32> to vector<16x64xf32>
    %c0_1 = arith.constant 0 : index
    %c0_2 = arith.constant 0 : index
    %6 = vector.load %arg3[%c0_1, %c0_2] : memref<64x32xf32, #tpu.memory_space<vmem>>, vector<64x32xf32>
    %cst = arith.constant dense<0.000000e+00> : vector<16x32xf32>
    %7 = tpu.matmul %5, %6, %cst {dimension_numbers = #tpu.dot_dimension_numbers<[1], [0], [0], [1], [0, 0, 1, 1], [], []>} : vector<16x64xf32>, vector<64x32xf32>, vector<16x32xf32> -> vector<16x32xf32>
    %c0_3 = arith.constant 0 : index
    %c1 = arith.constant 1 : index
    %8 = vector.load %arg1[%c0_3, %c1] : memref<16x8xi32, #tpu.memory_space<vmem>>, vector<16x1xi32>
    %9 = tpu.iota {dimensions = array<i32: 1>} : vector<16x4xi32>
    %10 = vector.broadcast %8 : vector<16x1xi32> to vector<16x4xi32>
    %11 = arith.cmpi eq, %10, %9 : vector<16x4xi32>
    %12 = arith.extui %11 : vector<16x4xi1> to vector<16x4xi32>
    %13 = arith.sitofp %12 : vector<16x4xi32> to vector<16x4xf32>
    %c0_4 = arith.constant 0 : index
    %c0_5 = arith.constant 0 : index
    %14 = vector.load %arg4[%c0_4, %c0_5] : memref<4x32xf32, #tpu.memory_space<vmem>>, vector<4x32xf32>
    %cst_6 = arith.constant dense<0.000000e+00> : vector<16x32xf32>
    %15 = tpu.matmul %13, %14, %cst_6 {dimension_numbers = #tpu.dot_dimension_numbers<[1], [0], [0], [1], [0, 0, 1, 1], [], []>} : vector<16x4xf32>, vector<4x32xf32>, vector<16x32xf32> -> vector<16x32xf32>
    %16 = arith.addf %7, %15 : vector<16x32xf32>
    %c0_7 = arith.constant 0 : index
    %c2 = arith.constant 2 : index
    %17 = vector.load %arg1[%c0_7, %c2] : memref<16x8xi32, #tpu.memory_space<vmem>>, vector<16x1xi32>
    %18 = tpu.iota {dimensions = array<i32: 1>} : vector<16x8xi32>
    %19 = vector.broadcast %17 : vector<16x1xi32> to vector<16x8xi32>
    %20 = arith.cmpi eq, %19, %18 : vector<16x8xi32>
    %21 = arith.extui %20 : vector<16x8xi1> to vector<16x8xi32>
    %22 = arith.sitofp %21 : vector<16x8xi32> to vector<16x8xf32>
    %c0_8 = arith.constant 0 : index
    %c0_9 = arith.constant 0 : index
    %23 = vector.load %arg5[%c0_8, %c0_9] : memref<8x32xf32, #tpu.memory_space<vmem>>, vector<8x32xf32>
    %cst_10 = arith.constant dense<0.000000e+00> : vector<16x32xf32>
    %24 = tpu.matmul %22, %23, %cst_10 {dimension_numbers = #tpu.dot_dimension_numbers<[1], [0], [0], [1], [0, 0, 1, 1], [], []>} : vector<16x8xf32>, vector<8x32xf32>, vector<16x32xf32> -> vector<16x32xf32>
    %25 = arith.addf %16, %24 : vector<16x32xf32>
    %c0_11 = arith.constant 0 : index
    %c3 = arith.constant 3 : index
    %26 = vector.load %arg1[%c0_11, %c3] : memref<16x8xi32, #tpu.memory_space<vmem>>, vector<16x1xi32>
    %27 = tpu.iota {dimensions = array<i32: 1>} : vector<16x16xi32>
    %28 = vector.broadcast %26 : vector<16x1xi32> to vector<16x16xi32>
    %29 = arith.cmpi eq, %28, %27 : vector<16x16xi32>
    %30 = arith.extui %29 : vector<16x16xi1> to vector<16x16xi32>
    %31 = arith.sitofp %30 : vector<16x16xi32> to vector<16x16xf32>
    %c0_12 = arith.constant 0 : index
    %c0_13 = arith.constant 0 : index
    %32 = vector.load %arg6[%c0_12, %c0_13] : memref<16x32xf32, #tpu.memory_space<vmem>>, vector<16x32xf32>
    %cst_14 = arith.constant dense<0.000000e+00> : vector<16x32xf32>
    %33 = tpu.matmul %31, %32, %cst_14 {dimension_numbers = #tpu.dot_dimension_numbers<[1], [0], [0], [1], [0, 0, 1, 1], [], []>} : vector<16x16xf32>, vector<16x32xf32>, vector<16x32xf32> -> vector<16x32xf32>
    %34 = arith.addf %25, %33 : vector<16x32xf32>
    %c0_15 = arith.constant 0 : index
    %c4 = arith.constant 4 : index
    %35 = vector.load %arg1[%c0_15, %c4] : memref<16x8xi32, #tpu.memory_space<vmem>>, vector<16x1xi32>
    %36 = tpu.iota {dimensions = array<i32: 1>} : vector<16x64xi32>
    %37 = vector.broadcast %35 : vector<16x1xi32> to vector<16x64xi32>
    %38 = arith.cmpi eq, %37, %36 : vector<16x64xi32>
    %39 = arith.extui %38 : vector<16x64xi1> to vector<16x64xi32>
    %40 = arith.sitofp %39 : vector<16x64xi32> to vector<16x64xf32>
    %c0_16 = arith.constant 0 : index
    %c0_17 = arith.constant 0 : index
    %41 = vector.load %arg3[%c0_16, %c0_17] : memref<64x32xf32, #tpu.memory_space<vmem>>, vector<64x32xf32>
    %cst_18 = arith.constant dense<0.000000e+00> : vector<16x32xf32>
    %42 = tpu.matmul %40, %41, %cst_18 {dimension_numbers = #tpu.dot_dimension_numbers<[1], [0], [0], [1], [0, 0, 1, 1], [], []>} : vector<16x64xf32>, vector<64x32xf32>, vector<16x32xf32> -> vector<16x32xf32>
    %c0_19 = arith.constant 0 : index
    %c5 = arith.constant 5 : index
    %43 = vector.load %arg1[%c0_19, %c5] : memref<16x8xi32, #tpu.memory_space<vmem>>, vector<16x1xi32>
    %44 = tpu.iota {dimensions = array<i32: 1>} : vector<16x8xi32>
    %45 = vector.broadcast %43 : vector<16x1xi32> to vector<16x8xi32>
    %46 = arith.cmpi eq, %45, %44 : vector<16x8xi32>
    %47 = arith.extui %46 : vector<16x8xi1> to vector<16x8xi32>
    %48 = arith.sitofp %47 : vector<16x8xi32> to vector<16x8xf32>
    %c0_20 = arith.constant 0 : index
    %c0_21 = arith.constant 0 : index
    %49 = vector.load %arg5[%c0_20, %c0_21] : memref<8x32xf32, #tpu.memory_space<vmem>>, vector<8x32xf32>
    %cst_22 = arith.constant dense<0.000000e+00> : vector<16x32xf32>
    %50 = tpu.matmul %48, %49, %cst_22 {dimension_numbers = #tpu.dot_dimension_numbers<[1], [0], [0], [1], [0, 0, 1, 1], [], []>} : vector<16x8xf32>, vector<8x32xf32>, vector<16x32xf32> -> vector<16x32xf32>
    %51 = arith.addf %42, %50 : vector<16x32xf32>
    %c0_23 = arith.constant 0 : index
    %c6 = arith.constant 6 : index
    %52 = vector.load %arg1[%c0_23, %c6] : memref<16x8xi32, #tpu.memory_space<vmem>>, vector<16x1xi32>
    %53 = tpu.iota {dimensions = array<i32: 1>} : vector<16x16xi32>
    %54 = vector.broadcast %52 : vector<16x1xi32> to vector<16x16xi32>
    %55 = arith.cmpi eq, %54, %53 : vector<16x16xi32>
    %56 = arith.extui %55 : vector<16x16xi1> to vector<16x16xi32>
    %57 = arith.sitofp %56 : vector<16x16xi32> to vector<16x16xf32>
    %c0_24 = arith.constant 0 : index
    %c0_25 = arith.constant 0 : index
    %58 = vector.load %arg6[%c0_24, %c0_25] : memref<16x32xf32, #tpu.memory_space<vmem>>, vector<16x32xf32>
    %cst_26 = arith.constant dense<0.000000e+00> : vector<16x32xf32>
    %59 = tpu.matmul %57, %58, %cst_26 {dimension_numbers = #tpu.dot_dimension_numbers<[1], [0], [0], [1], [0, 0, 1, 1], [], []>} : vector<16x16xf32>, vector<16x32xf32>, vector<16x32xf32> -> vector<16x32xf32>
    %60 = arith.addf %51, %59 : vector<16x32xf32>
    %c0_27 = arith.constant 0 : index
    %c0_28 = arith.constant 0 : index
    %61 = vector.load %arg0[%c0_27, %c0_28] : memref<1x16xi32, #tpu.memory_space<vmem>>, vector<1x16xi32>
    %c0_i32 = arith.constant 0 : i32
    %62 = vector.broadcast %c0_i32 : i32 to vector<1x16xi32>
    %63 = arith.cmpi ne, %61, %62 : vector<1x16xi32>
    %c0_29 = arith.constant 0 : index
    %c0_30 = arith.constant 0 : index
    %64 = vector.load %arg2[%c0_29, %c0_30] : memref<16x16xf32, #tpu.memory_space<vmem>>, vector<16x16xf32>
    %cst_31 = arith.constant 0.000000e+00 : f32
    %cst_32 = arith.constant -1.000000e+30 : f32
    %65 = vector.broadcast %cst_31 : f32 to vector<1x16xf32>
    %66 = vector.broadcast %cst_32 : f32 to vector<1x16xf32>
    %67 = arith.select %63, %65, %66 : vector<1x16xi1>, vector<1x16xf32>
    %68 = vector.broadcast %67 : vector<1x16xf32> to vector<16x16xf32>
    %69 = arith.addf %64, %68 : vector<16x16xf32>
    %70 = arith.truncf %34 : vector<16x32xf32> to vector<16x32xbf16>
    %71 = arith.truncf %34 : vector<16x32xf32> to vector<16x32xbf16>
    %c0_33 = arith.constant 0 : index
    %c0_34 = arith.constant 0 : index
    %c0_35 = arith.constant 0 : index
    %72 = vector.load %arg7[%c0_33, %c0_34, %c0_35] : memref<3x32x32xbf16, #tpu.memory_space<vmem>>, vector<1x32x32xbf16>
    %73 = vector.shape_cast %72 : vector<1x32x32xbf16> to vector<32x32xbf16>
    %cst_36 = arith.constant dense<0.000000e+00> : vector<16x32xf32>
    %74 = tpu.matmul %70, %73, %cst_36 {dimension_numbers = #tpu.dot_dimension_numbers<[1], [0], [0], [1], [0, 0, 1, 1], [], []>} : vector<16x32xbf16>, vector<32x32xbf16>, vector<16x32xf32> -> vector<16x32xf32>
    %c0_37 = arith.constant 0 : index
    %c0_38 = arith.constant 0 : index
    %c0_39 = arith.constant 0 : index
    %75 = vector.load %arg8[%c0_37, %c0_38, %c0_39] : memref<3x32x32xbf16, #tpu.memory_space<vmem>>, vector<1x32x32xbf16>
    %76 = vector.shape_cast %75 : vector<1x32x32xbf16> to vector<32x32xbf16>
    %cst_40 = arith.constant dense<0.000000e+00> : vector<16x32xf32>
    %77 = tpu.matmul %71, %76, %cst_40 {dimension_numbers = #tpu.dot_dimension_numbers<[1], [0], [0], [1], [0, 0, 1, 1], [], []>} : vector<16x32xbf16>, vector<32x32xbf16>, vector<16x32xf32> -> vector<16x32xf32>
    %c0_41 = arith.constant 0 : index
    %c0_42 = arith.constant 0 : index
    %c0_43 = arith.constant 0 : index
    %78 = vector.load %arg9[%c0_41, %c0_42, %c0_43] : memref<3x32x32xbf16, #tpu.memory_space<vmem>>, vector<1x32x32xbf16>
    %79 = vector.shape_cast %78 : vector<1x32x32xbf16> to vector<32x32xbf16>
    %cst_44 = arith.constant dense<0.000000e+00> : vector<16x32xf32>
    %80 = tpu.matmul %71, %79, %cst_44 {dimension_numbers = #tpu.dot_dimension_numbers<[1], [0], [0], [1], [0, 0, 1, 1], [], []>} : vector<16x32xbf16>, vector<32x32xbf16>, vector<16x32xf32> -> vector<16x32xf32>
    %81 = arith.truncf %74 : vector<16x32xf32> to vector<16x32xbf16>
    %82 = arith.truncf %77 : vector<16x32xf32> to vector<16x32xbf16>
    %cst_45 = arith.constant dense<0.000000e+00> : vector<16x16xf32>
    %83 = tpu.matmul %81, %82, %cst_45 {dimension_numbers = #tpu.dot_dimension_numbers<[1], [1], [0], [0], [0, 0, 1, 0], [], []>} : vector<16x32xbf16>, vector<16x32xbf16>, vector<16x16xf32> -> vector<16x16xf32>
    %cst_46 = arith.constant 0.176776692 : f32
    %84 = vector.broadcast %cst_46 : f32 to vector<16x16xf32>
    %85 = arith.mulf %83, %84 : vector<16x16xf32>
    %86 = arith.addf %85, %69 : vector<16x16xf32>
    %cst_47 = arith.constant dense<0xFF800000> : vector<16xf32>
    %87 = vector.multi_reduction <maximumf>, %86, %cst_47 [1] : vector<16x16xf32> to vector<16xf32>
    %88 = vector.shape_cast %87 : vector<16xf32> to vector<16x1xf32>
    %89 = vector.broadcast %88 : vector<16x1xf32> to vector<16x16xf32>
    %90 = arith.subf %86, %89 : vector<16x16xf32>
    %91 = math.exp %90 : vector<16x16xf32>
    %cst_48 = arith.constant dense<0.000000e+00> : vector<16xf32>
    %92 = vector.multi_reduction <add>, %91, %cst_48 [1] : vector<16x16xf32> to vector<16xf32>
    %93 = vector.shape_cast %92 : vector<16xf32> to vector<16x1xf32>
    %94 = vector.broadcast %93 : vector<16x1xf32> to vector<16x16xf32>
    %95 = arith.divf %91, %94 : vector<16x16xf32>
    %96 = arith.truncf %95 : vector<16x16xf32> to vector<16x16xbf16>
    %97 = arith.truncf %80 : vector<16x32xf32> to vector<16x32xbf16>
    %cst_49 = arith.constant dense<0.000000e+00> : vector<16x32xf32>
    %98 = tpu.matmul %96, %97, %cst_49 {dimension_numbers = #tpu.dot_dimension_numbers<[1], [0], [0], [1], [0, 0, 1, 1], [], []>} : vector<16x16xbf16>, vector<16x32xbf16>, vector<16x32xf32> -> vector<16x32xf32>
    %99 = arith.truncf %98 : vector<16x32xf32> to vector<16x32xbf16>
    %c0_50 = arith.constant 0 : index
    %c0_51 = arith.constant 0 : index
    %c0_52 = arith.constant 0 : index
    %100 = vector.load %arg10[%c0_50, %c0_51, %c0_52] : memref<3x32x32xbf16, #tpu.memory_space<vmem>>, vector<1x32x32xbf16>
    %101 = vector.shape_cast %100 : vector<1x32x32xbf16> to vector<32x32xbf16>
    %cst_53 = arith.constant dense<0.000000e+00> : vector<16x32xf32>
    %102 = tpu.matmul %99, %101, %cst_53 {dimension_numbers = #tpu.dot_dimension_numbers<[1], [0], [0], [1], [0, 0, 1, 1], [], []>} : vector<16x32xbf16>, vector<32x32xbf16>, vector<16x32xf32> -> vector<16x32xf32>
    %103 = arith.addf %102, %34 : vector<16x32xf32>
    %104 = arith.truncf %103 : vector<16x32xf32> to vector<16x32xbf16>
    %c0_54 = arith.constant 0 : index
    %c0_55 = arith.constant 0 : index
    %c0_56 = arith.constant 0 : index
    %105 = vector.load %arg11[%c0_54, %c0_55, %c0_56] : memref<3x32x64xbf16, #tpu.memory_space<vmem>>, vector<1x32x64xbf16>
    %106 = vector.shape_cast %105 : vector<1x32x64xbf16> to vector<32x64xbf16>
    %cst_57 = arith.constant dense<0.000000e+00> : vector<16x64xf32>
    %107 = tpu.matmul %104, %106, %cst_57 {dimension_numbers = #tpu.dot_dimension_numbers<[1], [0], [0], [1], [0, 0, 1, 1], [], []>} : vector<16x32xbf16>, vector<32x64xbf16>, vector<16x64xf32> -> vector<16x64xf32>
    %cst_58 = arith.constant 0.000000e+00 : f32
    %108 = vector.broadcast %cst_58 : f32 to vector<16x64xf32>
    %109 = arith.maximumf %107, %108 : vector<16x64xf32>
    %110 = arith.truncf %109 : vector<16x64xf32> to vector<16x64xbf16>
    %c0_59 = arith.constant 0 : index
    %c0_60 = arith.constant 0 : index
    %c0_61 = arith.constant 0 : index
    %111 = vector.load %arg12[%c0_59, %c0_60, %c0_61] : memref<3x64x32xbf16, #tpu.memory_space<vmem>>, vector<1x64x32xbf16>
    %112 = vector.shape_cast %111 : vector<1x64x32xbf16> to vector<64x32xbf16>
    %cst_62 = arith.constant dense<0.000000e+00> : vector<16x32xf32>
    %113 = tpu.matmul %110, %112, %cst_62 {dimension_numbers = #tpu.dot_dimension_numbers<[1], [0], [0], [1], [0, 0, 1, 1], [], []>} : vector<16x64xbf16>, vector<64x32xbf16>, vector<16x32xf32> -> vector<16x32xf32>
    %114 = arith.addf %113, %103 : vector<16x32xf32>
    %115 = arith.truncf %60 : vector<16x32xf32> to vector<16x32xbf16>
    %116 = arith.truncf %60 : vector<16x32xf32> to vector<16x32xbf16>
    %c1_63 = arith.constant 1 : index
    %c0_64 = arith.constant 0 : index
    %c0_65 = arith.constant 0 : index
    %117 = vector.load %arg7[%c1_63, %c0_64, %c0_65] : memref<3x32x32xbf16, #tpu.memory_space<vmem>>, vector<1x32x32xbf16>
    %118 = vector.shape_cast %117 : vector<1x32x32xbf16> to vector<32x32xbf16>
    %cst_66 = arith.constant dense<0.000000e+00> : vector<16x32xf32>
    %119 = tpu.matmul %115, %118, %cst_66 {dimension_numbers = #tpu.dot_dimension_numbers<[1], [0], [0], [1], [0, 0, 1, 1], [], []>} : vector<16x32xbf16>, vector<32x32xbf16>, vector<16x32xf32> -> vector<16x32xf32>
    %c1_67 = arith.constant 1 : index
    %c0_68 = arith.constant 0 : index
    %c0_69 = arith.constant 0 : index
    %120 = vector.load %arg8[%c1_67, %c0_68, %c0_69] : memref<3x32x32xbf16, #tpu.memory_space<vmem>>, vector<1x32x32xbf16>
    %121 = vector.shape_cast %120 : vector<1x32x32xbf16> to vector<32x32xbf16>
    %cst_70 = arith.constant dense<0.000000e+00> : vector<16x32xf32>
    %122 = tpu.matmul %116, %121, %cst_70 {dimension_numbers = #tpu.dot_dimension_numbers<[1], [0], [0], [1], [0, 0, 1, 1], [], []>} : vector<16x32xbf16>, vector<32x32xbf16>, vector<16x32xf32> -> vector<16x32xf32>
    %c1_71 = arith.constant 1 : index
    %c0_72 = arith.constant 0 : index
    %c0_73 = arith.constant 0 : index
    %123 = vector.load %arg9[%c1_71, %c0_72, %c0_73] : memref<3x32x32xbf16, #tpu.memory_space<vmem>>, vector<1x32x32xbf16>
    %124 = vector.shape_cast %123 : vector<1x32x32xbf16> to vector<32x32xbf16>
    %cst_74 = arith.constant dense<0.000000e+00> : vector<16x32xf32>
    %125 = tpu.matmul %116, %124, %cst_74 {dimension_numbers = #tpu.dot_dimension_numbers<[1], [0], [0], [1], [0, 0, 1, 1], [], []>} : vector<16x32xbf16>, vector<32x32xbf16>, vector<16x32xf32> -> vector<16x32xf32>
    %126 = arith.truncf %119 : vector<16x32xf32> to vector<16x32xbf16>
    %127 = arith.truncf %122 : vector<16x32xf32> to vector<16x32xbf16>
    %cst_75 = arith.constant dense<0.000000e+00> : vector<16x16xf32>
    %128 = tpu.matmul %126, %127, %cst_75 {dimension_numbers = #tpu.dot_dimension_numbers<[1], [1], [0], [0], [0, 0, 1, 0], [], []>} : vector<16x32xbf16>, vector<16x32xbf16>, vector<16x16xf32> -> vector<16x16xf32>
    %cst_76 = arith.constant 0.176776692 : f32
    %129 = vector.broadcast %cst_76 : f32 to vector<16x16xf32>
    %130 = arith.mulf %128, %129 : vector<16x16xf32>
    %131 = arith.addf %130, %69 : vector<16x16xf32>
    %cst_77 = arith.constant dense<0xFF800000> : vector<16xf32>
    %132 = vector.multi_reduction <maximumf>, %131, %cst_77 [1] : vector<16x16xf32> to vector<16xf32>
    %133 = vector.shape_cast %132 : vector<16xf32> to vector<16x1xf32>
    %134 = vector.broadcast %133 : vector<16x1xf32> to vector<16x16xf32>
    %135 = arith.subf %131, %134 : vector<16x16xf32>
    %136 = math.exp %135 : vector<16x16xf32>
    %cst_78 = arith.constant dense<0.000000e+00> : vector<16xf32>
    %137 = vector.multi_reduction <add>, %136, %cst_78 [1] : vector<16x16xf32> to vector<16xf32>
    %138 = vector.shape_cast %137 : vector<16xf32> to vector<16x1xf32>
    %139 = vector.broadcast %138 : vector<16x1xf32> to vector<16x16xf32>
    %140 = arith.divf %136, %139 : vector<16x16xf32>
    %141 = arith.truncf %140 : vector<16x16xf32> to vector<16x16xbf16>
    %142 = arith.truncf %125 : vector<16x32xf32> to vector<16x32xbf16>
    %cst_79 = arith.constant dense<0.000000e+00> : vector<16x32xf32>
    %143 = tpu.matmul %141, %142, %cst_79 {dimension_numbers = #tpu.dot_dimension_numbers<[1], [0], [0], [1], [0, 0, 1, 1], [], []>} : vector<16x16xbf16>, vector<16x32xbf16>, vector<16x32xf32> -> vector<16x32xf32>
    %144 = arith.truncf %143 : vector<16x32xf32> to vector<16x32xbf16>
    %c1_80 = arith.constant 1 : index
    %c0_81 = arith.constant 0 : index
    %c0_82 = arith.constant 0 : index
    %145 = vector.load %arg10[%c1_80, %c0_81, %c0_82] : memref<3x32x32xbf16, #tpu.memory_space<vmem>>, vector<1x32x32xbf16>
    %146 = vector.shape_cast %145 : vector<1x32x32xbf16> to vector<32x32xbf16>
    %cst_83 = arith.constant dense<0.000000e+00> : vector<16x32xf32>
    %147 = tpu.matmul %144, %146, %cst_83 {dimension_numbers = #tpu.dot_dimension_numbers<[1], [0], [0], [1], [0, 0, 1, 1], [], []>} : vector<16x32xbf16>, vector<32x32xbf16>, vector<16x32xf32> -> vector<16x32xf32>
    %148 = arith.addf %147, %60 : vector<16x32xf32>
    %149 = arith.truncf %148 : vector<16x32xf32> to vector<16x32xbf16>
    %c1_84 = arith.constant 1 : index
    %c0_85 = arith.constant 0 : index
    %c0_86 = arith.constant 0 : index
    %150 = vector.load %arg11[%c1_84, %c0_85, %c0_86] : memref<3x32x64xbf16, #tpu.memory_space<vmem>>, vector<1x32x64xbf16>
    %151 = vector.shape_cast %150 : vector<1x32x64xbf16> to vector<32x64xbf16>
    %cst_87 = arith.constant dense<0.000000e+00> : vector<16x64xf32>
    %152 = tpu.matmul %149, %151, %cst_87 {dimension_numbers = #tpu.dot_dimension_numbers<[1], [0], [0], [1], [0, 0, 1, 1], [], []>} : vector<16x32xbf16>, vector<32x64xbf16>, vector<16x64xf32> -> vector<16x64xf32>
    %cst_88 = arith.constant 0.000000e+00 : f32
    %153 = vector.broadcast %cst_88 : f32 to vector<16x64xf32>
    %154 = arith.maximumf %152, %153 : vector<16x64xf32>
    %155 = arith.truncf %154 : vector<16x64xf32> to vector<16x64xbf16>
    %c1_89 = arith.constant 1 : index
    %c0_90 = arith.constant 0 : index
    %c0_91 = arith.constant 0 : index
    %156 = vector.load %arg12[%c1_89, %c0_90, %c0_91] : memref<3x64x32xbf16, #tpu.memory_space<vmem>>, vector<1x64x32xbf16>
    %157 = vector.shape_cast %156 : vector<1x64x32xbf16> to vector<64x32xbf16>
    %cst_92 = arith.constant dense<0.000000e+00> : vector<16x32xf32>
    %158 = tpu.matmul %155, %157, %cst_92 {dimension_numbers = #tpu.dot_dimension_numbers<[1], [0], [0], [1], [0, 0, 1, 1], [], []>} : vector<16x64xbf16>, vector<64x32xbf16>, vector<16x32xf32> -> vector<16x32xf32>
    %159 = arith.addf %158, %148 : vector<16x32xf32>
    %160 = arith.truncf %159 : vector<16x32xf32> to vector<16x32xbf16>
    %161 = arith.truncf %114 : vector<16x32xf32> to vector<16x32xbf16>
    %c2_93 = arith.constant 2 : index
    %c0_94 = arith.constant 0 : index
    %c0_95 = arith.constant 0 : index
    %162 = vector.load %arg7[%c2_93, %c0_94, %c0_95] : memref<3x32x32xbf16, #tpu.memory_space<vmem>>, vector<1x32x32xbf16>
    %163 = vector.shape_cast %162 : vector<1x32x32xbf16> to vector<32x32xbf16>
    %cst_96 = arith.constant dense<0.000000e+00> : vector<16x32xf32>
    %164 = tpu.matmul %160, %163, %cst_96 {dimension_numbers = #tpu.dot_dimension_numbers<[1], [0], [0], [1], [0, 0, 1, 1], [], []>} : vector<16x32xbf16>, vector<32x32xbf16>, vector<16x32xf32> -> vector<16x32xf32>
    %c2_97 = arith.constant 2 : index
    %c0_98 = arith.constant 0 : index
    %c0_99 = arith.constant 0 : index
    %165 = vector.load %arg8[%c2_97, %c0_98, %c0_99] : memref<3x32x32xbf16, #tpu.memory_space<vmem>>, vector<1x32x32xbf16>
    %166 = vector.shape_cast %165 : vector<1x32x32xbf16> to vector<32x32xbf16>
    %cst_100 = arith.constant dense<0.000000e+00> : vector<16x32xf32>
    %167 = tpu.matmul %161, %166, %cst_100 {dimension_numbers = #tpu.dot_dimension_numbers<[1], [0], [0], [1], [0, 0, 1, 1], [], []>} : vector<16x32xbf16>, vector<32x32xbf16>, vector<16x32xf32> -> vector<16x32xf32>
    %c2_101 = arith.constant 2 : index
    %c0_102 = arith.constant 0 : index
    %c0_103 = arith.constant 0 : index
    %168 = vector.load %arg9[%c2_101, %c0_102, %c0_103] : memref<3x32x32xbf16, #tpu.memory_space<vmem>>, vector<1x32x32xbf16>
    %169 = vector.shape_cast %168 : vector<1x32x32xbf16> to vector<32x32xbf16>
    %cst_104 = arith.constant dense<0.000000e+00> : vector<16x32xf32>
    %170 = tpu.matmul %161, %169, %cst_104 {dimension_numbers = #tpu.dot_dimension_numbers<[1], [0], [0], [1], [0, 0, 1, 1], [], []>} : vector<16x32xbf16>, vector<32x32xbf16>, vector<16x32xf32> -> vector<16x32xf32>
    %171 = arith.truncf %164 : vector<16x32xf32> to vector<16x32xbf16>
    %172 = arith.truncf %167 : vector<16x32xf32> to vector<16x32xbf16>
    %cst_105 = arith.constant dense<0.000000e+00> : vector<16x16xf32>
    %173 = tpu.matmul %171, %172, %cst_105 {dimension_numbers = #tpu.dot_dimension_numbers<[1], [1], [0], [0], [0, 0, 1, 0], [], []>} : vector<16x32xbf16>, vector<16x32xbf16>, vector<16x16xf32> -> vector<16x16xf32>
    %cst_106 = arith.constant 0.176776692 : f32
    %174 = vector.broadcast %cst_106 : f32 to vector<16x16xf32>
    %175 = arith.mulf %173, %174 : vector<16x16xf32>
    %176 = arith.addf %175, %69 : vector<16x16xf32>
    %cst_107 = arith.constant dense<0xFF800000> : vector<16xf32>
    %177 = vector.multi_reduction <maximumf>, %176, %cst_107 [1] : vector<16x16xf32> to vector<16xf32>
    %178 = vector.shape_cast %177 : vector<16xf32> to vector<16x1xf32>
    %179 = vector.broadcast %178 : vector<16x1xf32> to vector<16x16xf32>
    %180 = arith.subf %176, %179 : vector<16x16xf32>
    %181 = math.exp %180 : vector<16x16xf32>
    %cst_108 = arith.constant dense<0.000000e+00> : vector<16xf32>
    %182 = vector.multi_reduction <add>, %181, %cst_108 [1] : vector<16x16xf32> to vector<16xf32>
    %183 = vector.shape_cast %182 : vector<16xf32> to vector<16x1xf32>
    %184 = vector.broadcast %183 : vector<16x1xf32> to vector<16x16xf32>
    %185 = arith.divf %181, %184 : vector<16x16xf32>
    %186 = arith.truncf %185 : vector<16x16xf32> to vector<16x16xbf16>
    %187 = arith.truncf %170 : vector<16x32xf32> to vector<16x32xbf16>
    %cst_109 = arith.constant dense<0.000000e+00> : vector<16x32xf32>
    %188 = tpu.matmul %186, %187, %cst_109 {dimension_numbers = #tpu.dot_dimension_numbers<[1], [0], [0], [1], [0, 0, 1, 1], [], []>} : vector<16x16xbf16>, vector<16x32xbf16>, vector<16x32xf32> -> vector<16x32xf32>
    %189 = arith.truncf %188 : vector<16x32xf32> to vector<16x32xbf16>
    %c2_110 = arith.constant 2 : index
    %c0_111 = arith.constant 0 : index
    %c0_112 = arith.constant 0 : index
    %190 = vector.load %arg10[%c2_110, %c0_111, %c0_112] : memref<3x32x32xbf16, #tpu.memory_space<vmem>>, vector<1x32x32xbf16>
    %191 = vector.shape_cast %190 : vector<1x32x32xbf16> to vector<32x32xbf16>
    %cst_113 = arith.constant dense<0.000000e+00> : vector<16x32xf32>
    %192 = tpu.matmul %189, %191, %cst_113 {dimension_numbers = #tpu.dot_dimension_numbers<[1], [0], [0], [1], [0, 0, 1, 1], [], []>} : vector<16x32xbf16>, vector<32x32xbf16>, vector<16x32xf32> -> vector<16x32xf32>
    %193 = arith.addf %192, %159 : vector<16x32xf32>
    %194 = arith.truncf %193 : vector<16x32xf32> to vector<16x32xbf16>
    %c2_114 = arith.constant 2 : index
    %c0_115 = arith.constant 0 : index
    %c0_116 = arith.constant 0 : index
    %195 = vector.load %arg11[%c2_114, %c0_115, %c0_116] : memref<3x32x64xbf16, #tpu.memory_space<vmem>>, vector<1x32x64xbf16>
    %196 = vector.shape_cast %195 : vector<1x32x64xbf16> to vector<32x64xbf16>
    %cst_117 = arith.constant dense<0.000000e+00> : vector<16x64xf32>
    %197 = tpu.matmul %194, %196, %cst_117 {dimension_numbers = #tpu.dot_dimension_numbers<[1], [0], [0], [1], [0, 0, 1, 1], [], []>} : vector<16x32xbf16>, vector<32x64xbf16>, vector<16x64xf32> -> vector<16x64xf32>
    %cst_118 = arith.constant 0.000000e+00 : f32
    %198 = vector.broadcast %cst_118 : f32 to vector<16x64xf32>
    %199 = arith.maximumf %197, %198 : vector<16x64xf32>
    %200 = arith.truncf %199 : vector<16x64xf32> to vector<16x64xbf16>
    %c2_119 = arith.constant 2 : index
    %c0_120 = arith.constant 0 : index
    %c0_121 = arith.constant 0 : index
    %201 = vector.load %arg12[%c2_119, %c0_120, %c0_121] : memref<3x64x32xbf16, #tpu.memory_space<vmem>>, vector<1x64x32xbf16>
    %202 = vector.shape_cast %201 : vector<1x64x32xbf16> to vector<64x32xbf16>
    %cst_122 = arith.constant dense<0.000000e+00> : vector<16x32xf32>
    %203 = tpu.matmul %200, %202, %cst_122 {dimension_numbers = #tpu.dot_dimension_numbers<[1], [0], [0], [1], [0, 0, 1, 1], [], []>} : vector<16x64xbf16>, vector<64x32xbf16>, vector<16x32xf32> -> vector<16x32xf32>
    %204 = arith.addf %203, %193 : vector<16x32xf32>
    %c0_123 = arith.constant 0 : index
    %c0_124 = arith.constant 0 : index
    %205 = vector.load %arg13[%c0_123, %c0_124] : memref<16x32xf32, #tpu.memory_space<vmem>>, vector<16x32xf32>
    tpu.vector_store %arg13[%c0_123, %c0_124], %204 {strides = array<i32>} : memref<16x32xf32, #tpu.memory_space<vmem>>, vector<16x32xf32>,
    return
  }
}

</mosaic_0001>

<llo_original>
// kernel: seq2seq_forward.1
$region0: #{seq2seq_forward.1}
  #allocation0 [shape = 'u32[]', space=smem, size = 0x4, offset = 0x4, fixed_abs, tag = 'smem constant byte address 0x4 - core index']
  #allocation1 [shape = 'u32[144,128]{1,0:T(1,128)}', space=vmem, size = 0x12000, scoped, tag = 'internal scratch']
  %s0 = inlined_call_operand.vmem [shape: s32[1,16], index: 0, kind: input, shape index: {}]
  %s1 = inlined_call_operand.vmem [shape: s32[16,8], index: 1, kind: input, shape index: {}]
  %s2 = inlined_call_operand.vmem [shape: f32[16,16], index: 2, kind: input, shape index: {}]
  %s3 = inlined_call_operand.vmem [shape: f32[64,32], index: 3, kind: input, shape index: {}]
  %s4 = inlined_call_operand.vmem [shape: f32[4,32], index: 4, kind: input, shape index: {}]
  %s5 = inlined_call_operand.vmem [shape: f32[8,32], index: 5, kind: input, shape index: {}]
  %s6 = inlined_call_operand.vmem [shape: f32[16,32], index: 6, kind: input, shape index: {}]
  %s7 = inlined_call_operand.vmem [shape: bf16[3,32,32], index: 7, kind: input, shape index: {}]
  %s8 = inlined_call_operand.vmem [shape: bf16[3,32,32], index: 8, kind: input, shape index: {}]
  %s9 = inlined_call_operand.vmem [shape: bf16[3,32,32], index: 9, kind: input, shape index: {}]
  %s10 = inlined_call_operand.vmem [shape: bf16[3,32,32], index: 10, kind: input, shape index: {}]
  %s11 = inlined_call_operand.vmem [shape: bf16[3,32,64], index: 11, kind: input, shape index: {}]
  %s12 = inlined_call_operand.vmem [shape: bf16[3,64,32], index: 12, kind: input, shape index: {}]
  %s13 = inlined_call_operand.hbm [shape: f32[16,32], index: 13, kind: output, shape index: {}]
  %s14 = sld [smem:[#allocation0]]
  $region62: #{seq2seq_forward.1} parent=0
    _
  %s16 = ssub.s32 1, %s14
  %s17 = scalar_select 0, %s16, %s14
  $region1: #{seq2seq_forward.1} parent=0
    #allocation2 [shape = 'u8[8192]{0}', space=vmem, size = 0x2000, scoped, tag = 'output window, operand 0, single buffered']
    #allocation3 [shape = 's32[1]{0}', space=sflag, size = 0x4, scoped, tag = 'scoped memory for seq2seq_forward.1']
    %18 = vsyncpa [#allocation3], 0
    // Predicated region
    $region2: #{seq2seq_forward.1} parent=1 // pred_check
      _
    $region3: #{seq2seq_forward.1} parent=1 // pred_check_branch
      %20 = sbr.rel (0) target = $region5
    $region4: #{seq2seq_forward.1} parent=1 // pred_region
      _
    $region5: #{seq2seq_forward.1} parent=1 // pred_fallthru
      _
    // Predicated region
    $region6: #{seq2seq_forward.1} parent=1 // pred_check
      _
    $region7: #{seq2seq_forward.1} parent=1 // pred_check_branch
      %22 = sbr.rel (0) target = $region9
    $region8: #{seq2seq_forward.1} parent=1 // pred_region
      _
    $region9: #{seq2seq_forward.1} parent=1 // pred_fallthru
      _
    // Predicated region
    $region10: #{seq2seq_forward.1} parent=1 // pred_check
      _
    $region11: #{seq2seq_forward.1} parent=1 // pred_check_branch
      %24 = sbr.rel (0) target = $region13
    $region12: #{seq2seq_forward.1} parent=1 // pred_region
      _
    $region13: #{seq2seq_forward.1} parent=1 // pred_fallthru
      _
    // Predicated region
    $region14: #{seq2seq_forward.1} parent=1 // pred_check
      _
    $region15: #{seq2seq_forward.1} parent=1 // pred_check_branch
      %26 = sbr.rel (0) target = $region17
    $region16: #{seq2seq_forward.1} parent=1 // pred_region
      _
    $region17: #{seq2seq_forward.1} parent=1 // pred_fallthru
      _
    // Predicated region
    $region18: #{seq2seq_forward.1} parent=1 // pred_check
      _
    $region19: #{seq2seq_forward.1} parent=1 // pred_check_branch
      %28 = sbr.rel (0) target = $region21
    $region20: #{seq2seq_forward.1} parent=1 // pred_region
      _
    $region21: #{seq2seq_forward.1} parent=1 // pred_fallthru
      _
    // Predicated region
    $region22: #{seq2seq_forward.1} parent=1 // pred_check
      _
    $region23: #{seq2seq_forward.1} parent=1 // pred_check_branch
      %30 = sbr.rel (0) target = $region25
    $region24: #{seq2seq_forward.1} parent=1 // pred_region
      _
    $region25: #{seq2seq_forward.1} parent=1 // pred_fallthru
      _
    // Predicated region
    $region26: #{seq2seq_forward.1} parent=1 // pred_check
      _
    $region27: #{seq2seq_forward.1} parent=1 // pred_check_branch
      %32 = sbr.rel (0) target = $region29
    $region28: #{seq2seq_forward.1} parent=1 // pred_region
      _
    $region29: #{seq2seq_forward.1} parent=1 // pred_fallthru
      _
    // Predicated region
    $region30: #{seq2seq_forward.1} parent=1 // pred_check
      _
    $region31: #{seq2seq_forward.1} parent=1 // pred_check_branch
      %34 = sbr.rel (0) target = $region33
    $region32: #{seq2seq_forward.1} parent=1 // pred_region
      _
    $region33: #{seq2seq_forward.1} parent=1 // pred_fallthru
      _
    // Predicated region
    $region34: #{seq2seq_forward.1} parent=1 // pred_check
      _
    $region35: #{seq2seq_forward.1} parent=1 // pred_check_branch
      %36 = sbr.rel (0) target = $region37
    $region36: #{seq2seq_forward.1} parent=1 // pred_region
      _
    $region37: #{seq2seq_forward.1} parent=1 // pred_fallthru
      _
    // Predicated region
    $region38: #{seq2seq_forward.1} parent=1 // pred_check
      _
    $region39: #{seq2seq_forward.1} parent=1 // pred_check_branch
      %38 = sbr.rel (0) target = $region41
    $region40: #{seq2seq_forward.1} parent=1 // pred_region
      _
    $region41: #{seq2seq_forward.1} parent=1 // pred_fallthru
      _
    // Predicated region
    $region42: #{seq2seq_forward.1} parent=1 // pred_check
      _
    $region43: #{seq2seq_forward.1} parent=1 // pred_check_branch
      %40 = sbr.rel (0) target = $region45
    $region44: #{seq2seq_forward.1} parent=1 // pred_region
      _
    $region45: #{seq2seq_forward.1} parent=1 // pred_fallthru
      _
    // Predicated region
    $region46: #{seq2seq_forward.1} parent=1 // pred_check
      _
    $region47: #{seq2seq_forward.1} parent=1 // pred_check_branch
      %42 = sbr.rel (0) target = $region49
    $region48: #{seq2seq_forward.1} parent=1 // pred_region
      _
    $region49: #{seq2seq_forward.1} parent=1 // pred_fallthru
      _
    // Predicated region
    $region50: #{seq2seq_forward.1} parent=1 // pred_check
      _
    $region51: #{seq2seq_forward.1} parent=1 // pred_check_branch
      %44 = sbr.rel (0) target = $region53
    $region52: #{seq2seq_forward.1} parent=1 // pred_region
      _
    $region53: #{seq2seq_forward.1} parent=1 // pred_fallthru
      _
    %v46 = vld [vmem:[%s1] sm:$0xff]
    %v47 = vld [vmem:[%s1 + $0x8] sm:$0xff]
    %v48 = vlaneseq
    %v49 = vand.u32 %v48, 127
    %50 = vset.pattern.permute.xlu0 0
    %51 = vperm.xlu0 %50, %v46
    %v52 = vpop.permute.xlu0 %51
    %53 = vset.pattern.permute.xlu0 0
    %54 = vperm.xlu0 %53, %v47
    %v55 = vpop.permute.xlu0 %54
    %vm56 = vcmp.eq.s32.totalorder %v52, %v49
    %vm57 = vcmp.eq.s32.totalorder %v55, %v49
    %v58 = vsel %vm56, 1, 0
    %v59 = vsel %vm57, 1, 0
    %v60 = vcvt.s32.f32 %v58
    %v61 = vcvt.s32.f32 %v59
    %v62 = vld [vmem:[%s3] sm:$0xff]
    %v63 = vld [vmem:[%s3 + $0x8] sm:$0xff]
    %v64 = vld [vmem:[%s3 + $0x10] sm:$0xff]
    %v65 = vld [vmem:[%s3 + $0x18] sm:$0xff]
    %v66 = vld [vmem:[%s3 + $0x20] sm:$0xff]
    %v67 = vld [vmem:[%s3 + $0x28] sm:$0xff]
    %v68 = vld [vmem:[%s3 + $0x30] sm:$0xff]
    %v69 = vld [vmem:[%s3 + $0x38] sm:$0xff]
    %70 = vset.pattern.permute.xlu0 1
    %71 = vperm.xlu0 %70, %v46
    %v72 = vpop.permute.xlu0 %71
    %73 = vset.pattern.permute.xlu0 1
    %74 = vperm.xlu0 %73, %v47
    %v75 = vpop.permute.xlu0 %74
    %vm76 = vcmp.eq.s32.totalorder %v72, %v49
    %vm77 = vcmp.eq.s32.totalorder %v75, %v49
    %v78 = vsel %vm76, 1, 0
    %v79 = vsel %vm77, 1, 0
    %v80 = vcvt.s32.f32 %v78
    %v81 = vcvt.s32.f32 %v79
    %v82 = vld [vmem:[%s4] sm:$0xf]
    %vm83 = vcmask 31744
    %v85 = vsel %vm83, %v80, 0
    %v88 = vsel %vm83, %v81, 0
    %vm90 = vcmask 1043456
    %v92 = vsel %vm90, %v82, 0
    %94 = vmatprep.subr.mxu0 0.0
    %95 = vmatpush1.msra.mxu0 %v92
    %96 = vmatprep.subr.mxu0 0.0
    %97 = vmatpush1.msra.mxu0 0.0
    %98 = vmatprep.subr.mxu0 0.0
    %99 = vmatpush1.msra.mxu0 0.0
    %100 = vmatprep.subr.mxu0 0.0
    %101 = vmatpush1.msra.mxu0 0.0
    %102 = vmatprep.subr.mxu0 0.0
    %103 = vmatpush1.msra.mxu0 0.0
    %104 = vmatprep.subr.mxu0 0.0
    %105 = vmatpush1.msra.mxu0 0.0
    %106 = vmatprep.subr.mxu0 0.0
    %107 = vmatpush1.msra.mxu0 0.0
    %108 = vmatprep.subr.mxu0 0.0
    %109 = vmatpush1.msra.mxu0 0.0
    %110 = vmatprep.subr.mxu0 0.0
    %111 = vmatpush1.msra.mxu0 0.0
    %112 = vmatprep.subr.mxu0 0.0
    %113 = vmatpush1.msra.mxu0 0.0
    %114 = vmatprep.subr.mxu0 0.0
    %115 = vmatpush1.msra.mxu0 0.0
    %116 = vmatprep.subr.mxu0 0.0
    %117 = vmatpush1.msra.mxu0 0.0
    %118 = vmatprep.subr.mxu0 0.0
    %119 = vmatpush1.msra.mxu0 0.0
    %120 = vmatprep.subr.mxu0 0.0
    %121 = vmatpush1.msra.mxu0 0.0
    %122 = vmatprep.subr.mxu0 0.0
    %123 = vmatpush1.msra.mxu0 0.0
    %124 = vmatprep.subr.mxu0 0.0
    %125 = vmatpush1.msra.mxu0 0.0
    %126 = vmatprep.subr.mxu0 0.0
    %127 = vmatpush1.msra.mxu0 0.0
    %128 = vmatprep.subr.mxu0 0.0
    %129 = vmatpush1.msra.mxu0 0.0
    %130 = vmatprep.subr.mxu0 0.0
    %131 = vmatpush1.msra.mxu0 0.0
    %132 = vmatprep.subr.mxu0 0.0
    %133 = vmatpush1.msra.mxu0 0.0
    %134 = vmatprep.subr.mxu0 0.0
    %135 = vmatpush1.msra.mxu0 0.0
    %136 = vmatprep.subr.mxu0 0.0
    %137 = vmatpush1.msra.mxu0 0.0
    %138 = vmatprep.subr.mxu0 0.0
    %139 = vmatpush1.msra.mxu0 0.0
    %140 = vmatprep.subr.mxu0 0.0
    %141 = vmatpush1.msra.mxu0 0.0
    %142 = vmatprep.subr.mxu0 0.0
    %143 = vmatpush1.msra.mxu0 0.0
    %144 = vmatprep.subr.mxu0 0.0
    %145 = vmatpush1.msra.mxu0 0.0
    %146 = vmatprep.subr.mxu0 0.0
    %147 = vmatpush1.msra.mxu0 0.0
    %148 = vmatprep.subr.mxu0 0.0
    %149 = vmatpush1.msra.mxu0 0.0
    %150 = vmatprep.subr.mxu0 0.0
    %151 = vmatpush1.msra.mxu0 0.0
    %152 = vmatprep.subr.mxu0 0.0
    %153 = vmatpush1.msra.mxu0 0.0
    %154 = vmatprep.subr.mxu0 0.0
    %155 = vmatpush1.msra.mxu0 0.0
    %156 = vmatprep.subr.mxu0 0.0
    %157 = vmatpush1.msra.mxu0 0.0
    %158 = vmatprep.mubr.f32.mxu0 0.0
    %159 = vmatmul.mubr.f32.gmra.mrb[0].mxu0 %v85
    %v160 = vpop.f32.mrb[0].mxu0
    %v161 = vadd.f32 0.0, %v160
    %v162 = vpop.f32.mrb[0].mxu0
    %163 = vmatprep.mubr.f32.mxu0 0.0
    %164 = vmatmul.mubr.f32.gmra.mrb[0].mxu0 %v88
    %v165 = vpop.f32.mrb[0].mxu0
    %v166 = vadd.f32 0.0, %v165
    %v167 = vpop.f32.mrb[0].mxu0
    %168 = vdwg.mxu0
    %vm169 = vcmask 523264
    %v171 = vsel %vm169, %v60, 0
    %v174 = vsel %vm169, %v61, 0
    %176 = vmatprep.subr.mxu0 0.0
    %177 = vmatpush1.msra.mxu0 %v62
    %178 = vmatprep.subr.mxu0 0.0
    %179 = vmatpush1.msra.mxu0 %v63
    %180 = vmatprep.subr.mxu0 0.0
    %181 = vmatpush1.msra.mxu0 %v64
    %182 = vmatprep.subr.mxu0 0.0
    %183 = vmatpush1.msra.mxu0 %v65
    %184 = vmatprep.subr.mxu0 0.0
    %185 = vmatpush1.msra.mxu0 %v66
    %186 = vmatprep.subr.mxu0 0.0
    %187 = vmatpush1.msra.mxu0 %v67
    %188 = vmatprep.subr.mxu0 0.0
    %189 = vmatpush1.msra.mxu0 %v68
    %190 = vmatprep.subr.mxu0 0.0
    %191 = vmatpush1.msra.mxu0 %v69
    %192 = vmatprep.subr.mxu0 0.0
    %193 = vmatpush1.msra.mxu0 0.0
    %194 = vmatprep.subr.mxu0 0.0
    %195 = vmatpush1.msra.mxu0 0.0
    %196 = vmatprep.subr.mxu0 0.0
    %197 = vmatpush1.msra.mxu0 0.0
    %198 = vmatprep.subr.mxu0 0.0
    %199 = vmatpush1.msra.mxu0 0.0
    %200 = vmatprep.subr.mxu0 0.0
    %201 = vmatpush1.msra.mxu0 0.0
    %202 = vmatprep.subr.mxu0 0.0
    %203 = vmatpush1.msra.mxu0 0.0
    %204 = vmatprep.subr.mxu0 0.0
    %205 = vmatpush1.msra.mxu0 0.0
    %206 = vmatprep.subr.mxu0 0.0
    %207 = vmatpush1.msra.mxu0 0.0
    %208 = vmatprep.subr.mxu0 0.0
    %209 = vmatpush1.msra.mxu0 0.0
    %210 = vmatprep.subr.mxu0 0.0
    %211 = vmatpush1.msra.mxu0 0.0
    %212 = vmatprep.subr.mxu0 0.0
    %213 = vmatpush1.msra.mxu0 0.0
    %214 = vmatprep.subr.mxu0 0.0
    %215 = vmatpush1.msra.mxu0 0.0
    %216 = vmatprep.subr.mxu0 0.0
    %217 = vmatpush1.msra.mxu0 0.0
    %218 = vmatprep.subr.mxu0 0.0
    %219 = vmatpush1.msra.mxu0 0.0
    %220 = vmatprep.subr.mxu0 0.0
    %221 = vmatpush1.msra.mxu0 0.0
    %222 = vmatprep.subr.mxu0 0.0
    %223 = vmatpush1.msra.mxu0 0.0
    %224 = vmatprep.subr.mxu0 0.0
    %225 = vmatpush1.msra.mxu0 0.0
    %226 = vmatprep.subr.mxu0 0.0
    %227 = vmatpush1.msra.mxu0 0.0
    %228 = vmatprep.subr.mxu0 0.0
    %229 = vmatpush1.msra.mxu0 0.0
    %230 = vmatprep.subr.mxu0 0.0
    %231 = vmatpush1.msra.mxu0 0.0
    %232 = vmatprep.subr.mxu0 0.0
    %233 = vmatpush1.msra.mxu0 0.0
    %234 = vmatprep.subr.mxu0 0.0
    %235 = vmatpush1.msra.mxu0 0.0
    %236 = vmatprep.subr.mxu0 0.0
    %237 = vmatpush1.msra.mxu0 0.0
    %238 = vmatprep.subr.mxu0 0.0
    %239 = vmatpush1.msra.mxu0 0.0
    %240 = vmatprep.mubr.f32.mxu0 0.0
    %241 = vmatmul.mubr.f32.gmra.mrb[0].mxu0 %v171
    %v242 = vpop.f32.mrb[0].mxu0
    %v243 = vadd.f32 %v161, %v242
    %v244 = vpop.f32.mrb[0].mxu0
    %245 = vmatprep.mubr.f32.mxu0 0.0
    %246 = vmatmul.mubr.f32.gmra.mrb[0].mxu0 %v174
    %v247 = vpop.f32.mrb[0].mxu0
    %v248 = vadd.f32 %v166, %v247
    %v249 = vpop.f32.mrb[0].mxu0
    %250 = vdwg.mxu0
    %251 = vset.pattern.permute.xlu0 2
    %252 = vperm.xlu0 %251, %v46
    %v253 = vpop.permute.xlu0 %252
    %254 = vset.pattern.permute.xlu0 2
    %255 = vperm.xlu0 %254, %v47
    %v256 = vpop.permute.xlu0 %255
    %vm257 = vcmp.eq.s32.totalorder %v253, %v49
    %vm258 = vcmp.eq.s32.totalorder %v256, %v49
    %v259 = vsel %vm257, 1, 0
    %v260 = vsel %vm258, 1, 0
    %v261 = vcvt.s32.f32 %v259
    %v262 = vcvt.s32.f32 %v260
    %v263 = vld [vmem:[%s5] sm:$0xff]
    %vm264 = vcmask 64512
    %v266 = vsel %vm264, %v261, 0
    %v269 = vsel %vm264, %v262, 0
    %271 = vmatprep.subr.mxu0 0.0
    %272 = vmatpush1.msra.mxu0 %v263
    %273 = vmatprep.subr.mxu0 0.0
    %274 = vmatpush1.msra.mxu0 0.0
    %275 = vmatprep.subr.mxu0 0.0
    %276 = vmatpush1.msra.mxu0 0.0
    %277 = vmatprep.subr.mxu0 0.0
    %278 = vmatpush1.msra.mxu0 0.0
    %279 = vmatprep.subr.mxu0 0.0
    %280 = vmatpush1.msra.mxu0 0.0
    %281 = vmatprep.subr.mxu0 0.0
    %282 = vmatpush1.msra.mxu0 0.0
    %283 = vmatprep.subr.mxu0 0.0
    %284 = vmatpush1.msra.mxu0 0.0
    %285 = vmatprep.subr.mxu0 0.0
    %286 = vmatpush1.msra.mxu0 0.0
    %287 = vmatprep.subr.mxu0 0.0
    %288 = vmatpush1.msra.mxu0 0.0
    %289 = vmatprep.subr.mxu0 0.0
    %290 = vmatpush1.msra.mxu0 0.0
    %291 = vmatprep.subr.mxu0 0.0
    %292 = vmatpush1.msra.mxu0 0.0
    %293 = vmatprep.subr.mxu0 0.0
    %294 = vmatpush1.msra.mxu0 0.0
    %295 = vmatprep.subr.mxu0 0.0
    %296 = vmatpush1.msra.mxu0 0.0
    %297 = vmatprep.subr.mxu0 0.0
    %298 = vmatpush1.msra.mxu0 0.0
    %299 = vmatprep.subr.mxu0 0.0
    %300 = vmatpush1.msra.mxu0 0.0
    %301 = vmatprep.subr.mxu0 0.0
    %302 = vmatpush1.msra.mxu0 0.0
    %303 = vmatprep.subr.mxu0 0.0
    %304 = vmatpush1.msra.mxu0 0.0
    %305 = vmatprep.subr.mxu0 0.0
    %306 = vmatpush1.msra.mxu0 0.0
    %307 = vmatprep.subr.mxu0 0.0
    %308 = vmatpush1.msra.mxu0 0.0
    %309 = vmatprep.subr.mxu0 0.0
    %310 = vmatpush1.msra.mxu0 0.0
    %311 = vmatprep.subr.mxu0 0.0
    %312 = vmatpush1.msra.mxu0 0.0
    %313 = vmatprep.subr.mxu0 0.0
    %314 = vmatpush1.msra.mxu0 0.0
    %315 = vmatprep.subr.mxu0 0.0
    %316 = vmatpush1.msra.mxu0 0.0
    %317 = vmatprep.subr.mxu0 0.0
    %318 = vmatpush1.msra.mxu0 0.0
    %319 = vmatprep.subr.mxu0 0.0
    %320 = vmatpush1.msra.mxu0 0.0
    %321 = vmatprep.subr.mxu0 0.0
    %322 = vmatpush1.msra.mxu0 0.0
    %323 = vmatprep.subr.mxu0 0.0
    %324 = vmatpush1.msra.mxu0 0.0
    %325 = vmatprep.subr.mxu0 0.0
    %326 = vmatpush1.msra.mxu0 0.0
    %327 = vmatprep.subr.mxu0 0.0
    %328 = vmatpush1.msra.mxu0 0.0
    %329 = vmatprep.subr.mxu0 0.0
    %330 = vmatpush1.msra.mxu0 0.0
    %331 = vmatprep.subr.mxu0 0.0
    %332 = vmatpush1.msra.mxu0 0.0
    %333 = vmatprep.subr.mxu0 0.0
    %334 = vmatpush1.msra.mxu0 0.0
    %335 = vmatprep.mubr.f32.mxu0 0.0
    %336 = vmatmul.mubr.f32.gmra.mrb[0].mxu0 %v266
    %v337 = vpop.f32.mrb[0].mxu0
    %v338 = vadd.f32 0.0, %v337
    %v339 = vpop.f32.mrb[0].mxu0
    %340 = vmatprep.mubr.f32.mxu0 0.0
    %341 = vmatmul.mubr.f32.gmra.mrb[0].mxu0 %v269
    %v342 = vpop.f32.mrb[0].mxu0
    %v343 = vadd.f32 0.0, %v342
    %v344 = vpop.f32.mrb[0].mxu0
    %345 = vdwg.mxu0
    %v346 = vadd.f32 %v243, %v338
    %v347 = vadd.f32 %v248, %v343
    %348 = vset.pattern.permute.xlu0 3
    %349 = vperm.xlu0 %348, %v46
    %v350 = vpop.permute.xlu0 %349
    %351 = vset.pattern.permute.xlu0 3
    %352 = vperm.xlu0 %351, %v47
    %v353 = vpop.permute.xlu0 %352
    %vm354 = vcmp.eq.s32.totalorder %v350, %v49
    %vm355 = vcmp.eq.s32.totalorder %v353, %v49
    %v356 = vsel %vm354, 1, 0
    %v357 = vsel %vm355, 1, 0
    %v358 = vcvt.s32.f32 %v356
    %v359 = vcvt.s32.f32 %v357
    %v360 = vld [vmem:[%s6] sm:$0xff]
    %v361 = vld [vmem:[%s6 + $0x8] sm:$0xff]
    %vm362 = vcmask 130048
    %v364 = vsel %vm362, %v358, 0
    %v367 = vsel %vm362, %v359, 0
    %369 = vmatprep.subr.mxu0 0.0
    %370 = vmatpush1.msra.mxu0 %v360
    %371 = vmatprep.subr.mxu0 0.0
    %372 = vmatpush1.msra.mxu0 %v361
    %373 = vmatprep.subr.mxu0 0.0
    %374 = vmatpush1.msra.mxu0 0.0
    %375 = vmatprep.subr.mxu0 0.0
    %376 = vmatpush1.msra.mxu0 0.0
    %377 = vmatprep.subr.mxu0 0.0
    %378 = vmatpush1.msra.mxu0 0.0
    %379 = vmatprep.subr.mxu0 0.0
    %380 = vmatpush1.msra.mxu0 0.0
    %381 = vmatprep.subr.mxu0 0.0
    %382 = vmatpush1.msra.mxu0 0.0
    %383 = vmatprep.subr.mxu0 0.0
    %384 = vmatpush1.msra.mxu0 0.0
    %385 = vmatprep.subr.mxu0 0.0
    %386 = vmatpush1.msra.mxu0 0.0
    %387 = vmatprep.subr.mxu0 0.0
    %388 = vmatpush1.msra.mxu0 0.0
    %389 = vmatprep.subr.mxu0 0.0
    %390 = vmatpush1.msra.mxu0 0.0
    %391 = vmatprep.subr.mxu0 0.0
    %392 = vmatpush1.msra.mxu0 0.0
    %393 = vmatprep.subr.mxu0 0.0
    %394 = vmatpush1.msra.mxu0 0.0
    %395 = vmatprep.subr.mxu0 0.0
    %396 = vmatpush1.msra.mxu0 0.0
    %397 = vmatprep.subr.mxu0 0.0
    %398 = vmatpush1.msra.mxu0 0.0
    %399 = vmatprep.subr.mxu0 0.0
    %400 = vmatpush1.msra.mxu0 0.0
    %401 = vmatprep.subr.mxu0 0.0
    %402 = vmatpush1.msra.mxu0 0.0
    %403 = vmatprep.subr.mxu0 0.0
    %404 = vmatpush1.msra.mxu0 0.0
    %405 = vmatprep.subr.mxu0 0.0
    %406 = vmatpush1.msra.mxu0 0.0
    %407 = vmatprep.subr.mxu0 0.0
    %408 = vmatpush1.msra.mxu0 0.0
    %409 = vmatprep.subr.mxu0 0.0
    %410 = vmatpush1.msra.mxu0 0.0
    %411 = vmatprep.subr.mxu0 0.0
    %412 = vmatpush1.msra.mxu0 0.0
    %413 = vmatprep.subr.mxu0 0.0
    %414 = vmatpush1.msra.mxu0 0.0
    %415 = vmatprep.subr.mxu0 0.0
    %416 = vmatpush1.msra.mxu0 0.0
    %417 = vmatprep.subr.mxu0 0.0
    %418 = vmatpush1.msra.mxu0 0.0
    %419 = vmatprep.subr.mxu0 0.0
    %420 = vmatpush1.msra.mxu0 0.0
    %421 = vmatprep.subr.mxu0 0.0
    %422 = vmatpush1.msra.mxu0 0.0
    %423 = vmatprep.subr.mxu0 0.0
    %424 = vmatpush1.msra.mxu0 0.0
    %425 = vmatprep.subr.mxu0 0.0
    %426 = vmatpush1.msra.mxu0 0.0
    %427 = vmatprep.subr.mxu0 0.0
    %428 = vmatpush1.msra.mxu0 0.0
    %429 = vmatprep.subr.mxu0 0.0
    %430 = vmatpush1.msra.mxu0 0.0
    %431 = vmatprep.subr.mxu0 0.0
    %432 = vmatpush1.msra.mxu0 0.0
    %433 = vmatprep.mubr.f32.mxu0 0.0
    %434 = vmatmul.mubr.f32.gmra.mrb[0].mxu0 %v364
    %v435 = vpop.f32.mrb[0].mxu0
    %v436 = vadd.f32 0.0, %v435
    %v437 = vpop.f32.mrb[0].mxu0
    %438 = vmatprep.mubr.f32.mxu0 0.0
    %439 = vmatmul.mubr.f32.gmra.mrb[0].mxu0 %v367
    %v440 = vpop.f32.mrb[0].mxu0
    %v441 = vadd.f32 0.0, %v440
    %v442 = vpop.f32.mrb[0].mxu0
    %443 = vdwg.mxu0
    %v444 = vadd.f32 %v346, %v436
    %v445 = vadd.f32 %v347, %v441
    %446 = vset.pattern.permute.xlu0 4
    %447 = vperm.xlu0 %446, %v46
    %v448 = vpop.permute.xlu0 %447
    %449 = vset.pattern.permute.xlu0 4
    %450 = vperm.xlu0 %449, %v47
    %v451 = vpop.permute.xlu0 %450
    %vm452 = vcmp.eq.s32.totalorder %v448, %v49
    %vm453 = vcmp.eq.s32.totalorder %v451, %v49
    %v454 = vsel %vm452, 1, 0
    %v455 = vsel %vm453, 1, 0
    %v456 = vcvt.s32.f32 %v454
    %v457 = vcvt.s32.f32 %v455
    %458 = vset.pattern.permute.xlu0 5
    %459 = vperm.xlu0 %458, %v46
    %v460 = vpop.permute.xlu0 %459
    %461 = vset.pattern.permute.xlu0 5
    %462 = vperm.xlu0 %461, %v47
    %v463 = vpop.permute.xlu0 %462
    %vm464 = vcmp.eq.s32.totalorder %v460, %v49
    %vm465 = vcmp.eq.s32.totalorder %v463, %v49
    %v466 = vsel %vm464, 1, 0
    %v467 = vsel %vm465, 1, 0
    %v468 = vcvt.s32.f32 %v466
    %v469 = vcvt.s32.f32 %v467
    %v471 = vsel %vm264, %v468, 0
    %v474 = vsel %vm264, %v469, 0
    %476 = vmatprep.subr.mxu0 0.0
    %477 = vmatpush1.msra.mxu0 %v263
    %478 = vmatprep.subr.mxu0 0.0
    %479 = vmatpush1.msra.mxu0 0.0
    %480 = vmatprep.subr.mxu0 0.0
    %481 = vmatpush1.msra.mxu0 0.0
    %482 = vmatprep.subr.mxu0 0.0
    %483 = vmatpush1.msra.mxu0 0.0
    %484 = vmatprep.subr.mxu0 0.0
    %485 = vmatpush1.msra.mxu0 0.0
    %486 = vmatprep.subr.mxu0 0.0
    %487 = vmatpush1.msra.mxu0 0.0
    %488 = vmatprep.subr.mxu0 0.0
    %489 = vmatpush1.msra.mxu0 0.0
    %490 = vmatprep.subr.mxu0 0.0
    %491 = vmatpush1.msra.mxu0 0.0
    %492 = vmatprep.subr.mxu0 0.0
    %493 = vmatpush1.msra.mxu0 0.0
    %494 = vmatprep.subr.mxu0 0.0
    %495 = vmatpush1.msra.mxu0 0.0
    %496 = vmatprep.subr.mxu0 0.0
    %497 = vmatpush1.msra.mxu0 0.0
    %498 = vmatprep.subr.mxu0 0.0
    %499 = vmatpush1.msra.mxu0 0.0
    %500 = vmatprep.subr.mxu0 0.0
    %501 = vmatpush1.msra.mxu0 0.0
    %502 = vmatprep.subr.mxu0 0.0
    %503 = vmatpush1.msra.mxu0 0.0
    %504 = vmatprep.subr.mxu0 0.0
    %505 = vmatpush1.msra.mxu0 0.0
    %506 = vmatprep.subr.mxu0 0.0
    %507 = vmatpush1.msra.mxu0 0.0
    %508 = vmatprep.subr.mxu0 0.0
    %509 = vmatpush1.msra.mxu0 0.0
    %510 = vmatprep.subr.mxu0 0.0
    %511 = vmatpush1.msra.mxu0 0.0
    %512 = vmatprep.subr.mxu0 0.0
    %513 = vmatpush1.msra.mxu0 0.0
    %514 = vmatprep.subr.mxu0 0.0
    %515 = vmatpush1.msra.mxu0 0.0
    %516 = vmatprep.subr.mxu0 0.0
    %517 = vmatpush1.msra.mxu0 0.0
    %518 = vmatprep.subr.mxu0 0.0
    %519 = vmatpush1.msra.mxu0 0.0
    %520 = vmatprep.subr.mxu0 0.0
    %521 = vmatpush1.msra.mxu0 0.0
    %522 = vmatprep.subr.mxu0 0.0
    %523 = vmatpush1.msra.mxu0 0.0
    %524 = vmatprep.subr.mxu0 0.0
    %525 = vmatpush1.msra.mxu0 0.0
    %526 = vmatprep.subr.mxu0 0.0
    %527 = vmatpush1.msra.mxu0 0.0
    %528 = vmatprep.subr.mxu0 0.0
    %529 = vmatpush1.msra.mxu0 0.0
    %530 = vmatprep.subr.mxu0 0.0
    %531 = vmatpush1.msra.mxu0 0.0
    %532 = vmatprep.subr.mxu0 0.0
    %533 = vmatpush1.msra.mxu0 0.0
    %534 = vmatprep.subr.mxu0 0.0
    %535 = vmatpush1.msra.mxu0 0.0
    %536 = vmatprep.subr.mxu0 0.0
    %537 = vmatpush1.msra.mxu0 0.0
    %538 = vmatprep.subr.mxu0 0.0
    %539 = vmatpush1.msra.mxu0 0.0
    %540 = vmatprep.mubr.f32.mxu0 0.0
    %541 = vmatmul.mubr.f32.gmra.mrb[0].mxu0 %v471
    %v542 = vpop.f32.mrb[0].mxu0
    %v543 = vadd.f32 0.0, %v542
    %v544 = vpop.f32.mrb[0].mxu0
    %545 = vmatprep.mubr.f32.mxu0 0.0
    %546 = vmatmul.mubr.f32.gmra.mrb[0].mxu0 %v474
    %v547 = vpop.f32.mrb[0].mxu0
    %v548 = vadd.f32 0.0, %v547
    %v549 = vpop.f32.mrb[0].mxu0
    %550 = vdwg.mxu0
    %v552 = vsel %vm169, %v456, 0
    %v555 = vsel %vm169, %v457, 0
    %557 = vmatprep.subr.mxu0 0.0
    %558 = vmatpush1.msra.mxu0 %v62
    %559 = vmatprep.subr.mxu0 0.0
    %560 = vmatpush1.msra.mxu0 %v63
    %561 = vmatprep.subr.mxu0 0.0
    %562 = vmatpush1.msra.mxu0 %v64
    %563 = vmatprep.subr.mxu0 0.0
    %564 = vmatpush1.msra.mxu0 %v65
    %565 = vmatprep.subr.mxu0 0.0
    %566 = vmatpush1.msra.mxu0 %v66
    %567 = vmatprep.subr.mxu0 0.0
    %568 = vmatpush1.msra.mxu0 %v67
    %569 = vmatprep.subr.mxu0 0.0
    %570 = vmatpush1.msra.mxu0 %v68
    %571 = vmatprep.subr.mxu0 0.0
    %572 = vmatpush1.msra.mxu0 %v69
    %573 = vmatprep.subr.mxu0 0.0
    %574 = vmatpush1.msra.mxu0 0.0
    %575 = vmatprep.subr.mxu0 0.0
    %576 = vmatpush1.msra.mxu0 0.0
    %577 = vmatprep.subr.mxu0 0.0
    %578 = vmatpush1.msra.mxu0 0.0
    %579 = vmatprep.subr.mxu0 0.0
    %580 = vmatpush1.msra.mxu0 0.0
    %581 = vmatprep.subr.mxu0 0.0
    %582 = vmatpush1.msra.mxu0 0.0
    %583 = vmatprep.subr.mxu0 0.0
    %584 = vmatpush1.msra.mxu0 0.0
    %585 = vmatprep.subr.mxu0 0.0
    %586 = vmatpush1.msra.mxu0 0.0
    %587 = vmatprep.subr.mxu0 0.0
    %588 = vmatpush1.msra.mxu0 0.0
    %589 = vmatprep.subr.mxu0 0.0
    %590 = vmatpush1.msra.mxu0 0.0
    %591 = vmatprep.subr.mxu0 0.0
    %592 = vmatpush1.msra.mxu0 0.0
    %593 = vmatprep.subr.mxu0 0.0
    %594 = vmatpush1.msra.mxu0 0.0
    %595 = vmatprep.subr.mxu0 0.0
    %596 = vmatpush1.msra.mxu0 0.0
    %597 = vmatprep.subr.mxu0 0.0
    %598 = vmatpush1.msra.mxu0 0.0
    %599 = vmatprep.subr.mxu0 0.0
    %600 = vmatpush1.msra.mxu0 0.0
    %601 = vmatprep.subr.mxu0 0.0
    %602 = vmatpush1.msra.mxu0 0.0
    %603 = vmatprep.subr.mxu0 0.0
    %604 = vmatpush1.msra.mxu0 0.0
    %605 = vmatprep.subr.mxu0 0.0
    %606 = vmatpush1.msra.mxu0 0.0
    %607 = vmatprep.subr.mxu0 0.0
    %608 = vmatpush1.msra.mxu0 0.0
    %609 = vmatprep.subr.mxu0 0.0
    %610 = vmatpush1.msra.mxu0 0.0
    %611 = vmatprep.subr.mxu0 0.0
    %612 = vmatpush1.msra.mxu0 0.0
    %613 = vmatprep.subr.mxu0 0.0
    %614 = vmatpush1.msra.mxu0 0.0
    %615 = vmatprep.subr.mxu0 0.0
    %616 = vmatpush1.msra.mxu0 0.0
    %617 = vmatprep.subr.mxu0 0.0
    %618 = vmatpush1.msra.mxu0 0.0
    %619 = vmatprep.subr.mxu0 0.0
    %620 = vmatpush1.msra.mxu0 0.0
    %621 = vmatprep.mubr.f32.mxu0 0.0
    %622 = vmatmul.mubr.f32.gmra.mrb[0].mxu0 %v552
    %v623 = vpop.f32.mrb[0].mxu0
    %v624 = vadd.f32 %v543, %v623
    %v625 = vpop.f32.mrb[0].mxu0
    %626 = vmatprep.mubr.f32.mxu0 0.0
    %627 = vmatmul.mubr.f32.gmra.mrb[0].mxu0 %v555
    %v628 = vpop.f32.mrb[0].mxu0
    %v629 = vadd.f32 %v548, %v628
    %v630 = vpop.f32.mrb[0].mxu0
    %631 = vdwg.mxu0
    %632 = vset.pattern.permute.xlu0 6
    %633 = vperm.xlu0 %632, %v46
    %v634 = vpop.permute.xlu0 %633
    %635 = vset.pattern.permute.xlu0 6
    %636 = vperm.xlu0 %635, %v47
    %v637 = vpop.permute.xlu0 %636
    %vm638 = vcmp.eq.s32.totalorder %v634, %v49
    %vm639 = vcmp.eq.s32.totalorder %v637, %v49
    %v640 = vsel %vm638, 1, 0
    %v641 = vsel %vm639, 1, 0
    %v642 = vcvt.s32.f32 %v640
    %v643 = vcvt.s32.f32 %v641
    %v645 = vsel %vm362, %v642, 0
    %v648 = vsel %vm362, %v643, 0
    %650 = vmatprep.subr.mxu0 0.0
    %651 = vmatpush1.msra.mxu0 %v360
    %652 = vmatprep.subr.mxu0 0.0
    %653 = vmatpush1.msra.mxu0 %v361
    %654 = vmatprep.subr.mxu0 0.0
    %655 = vmatpush1.msra.mxu0 0.0
    %656 = vmatprep.subr.mxu0 0.0
    %657 = vmatpush1.msra.mxu0 0.0
    %658 = vmatprep.subr.mxu0 0.0
    %659 = vmatpush1.msra.mxu0 0.0
    %660 = vmatprep.subr.mxu0 0.0
    %661 = vmatpush1.msra.mxu0 0.0
    %662 = vmatprep.subr.mxu0 0.0
    %663 = vmatpush1.msra.mxu0 0.0
    %664 = vmatprep.subr.mxu0 0.0
    %665 = vmatpush1.msra.mxu0 0.0
    %666 = vmatprep.subr.mxu0 0.0
    %667 = vmatpush1.msra.mxu0 0.0
    %668 = vmatprep.subr.mxu0 0.0
    %669 = vmatpush1.msra.mxu0 0.0
    %670 = vmatprep.subr.mxu0 0.0
    %671 = vmatpush1.msra.mxu0 0.0
    %672 = vmatprep.subr.mxu0 0.0
    %673 = vmatpush1.msra.mxu0 0.0
    %674 = vmatprep.subr.mxu0 0.0
    %675 = vmatpush1.msra.mxu0 0.0
    %676 = vmatprep.subr.mxu0 0.0
    %677 = vmatpush1.msra.mxu0 0.0
    %678 = vmatprep.subr.mxu0 0.0
    %679 = vmatpush1.msra.mxu0 0.0
    %680 = vmatprep.subr.mxu0 0.0
    %681 = vmatpush1.msra.mxu0 0.0
    %682 = vmatprep.subr.mxu0 0.0
    %683 = vmatpush1.msra.mxu0 0.0
    %684 = vmatprep.subr.mxu0 0.0
    %685 = vmatpush1.msra.mxu0 0.0
    %686 = vmatprep.subr.mxu0 0.0
    %687 = vmatpush1.msra.mxu0 0.0
    %688 = vmatprep.subr.mxu0 0.0
    %689 = vmatpush1.msra.mxu0 0.0
    %690 = vmatprep.subr.mxu0 0.0
    %691 = vmatpush1.msra.mxu0 0.0
    %692 = vmatprep.subr.mxu0 0.0
    %693 = vmatpush1.msra.mxu0 0.0
    %694 = vmatprep.subr.mxu0 0.0
    %695 = vmatpush1.msra.mxu0 0.0
    %696 = vmatprep.subr.mxu0 0.0
    %697 = vmatpush1.msra.mxu0 0.0
    %698 = vmatprep.subr.mxu0 0.0
    %699 = vmatpush1.msra.mxu0 0.0
    %700 = vmatprep.subr.mxu0 0.0
    %701 = vmatpush1.msra.mxu0 0.0
    %702 = vmatprep.subr.mxu0 0.0
    %703 = vmatpush1.msra.mxu0 0.0
    %704 = vmatprep.subr.mxu0 0.0
    %705 = vmatpush1.msra.mxu0 0.0
    %706 = vmatprep.subr.mxu0 0.0
    %707 = vmatpush1.msra.mxu0 0.0
    %708 = vmatprep.subr.mxu0 0.0
    %709 = vmatpush1.msra.mxu0 0.0
    %710 = vmatprep.subr.mxu0 0.0
    %711 = vmatpush1.msra.mxu0 0.0
    %712 = vmatprep.subr.mxu0 0.0
    %713 = vmatpush1.msra.mxu0 0.0
    %714 = vmatprep.mubr.f32.mxu0 0.0
    %715 = vmatmul.mubr.f32.gmra.mrb[0].mxu0 %v645
    %v716 = vpop.f32.mrb[0].mxu0
    %v717 = vadd.f32 0.0, %v716
    %v718 = vpop.f32.mrb[0].mxu0
    %719 = vmatprep.mubr.f32.mxu0 0.0
    %720 = vmatmul.mubr.f32.gmra.mrb[0].mxu0 %v648
    %v721 = vpop.f32.mrb[0].mxu0
    %v722 = vadd.f32 0.0, %v721
    %v723 = vpop.f32.mrb[0].mxu0
    %724 = vdwg.mxu0
    %v725 = vadd.f32 %v624, %v717
    %v726 = vadd.f32 %v629, %v722
    %v727 = vld [vmem:[%s0] sm:$0x1]
    %vm728 = vcmp.ne.s32.totalorder %v727, 0
    %v729 = vld [vmem:[%s2] sm:$0xff]
    %v730 = vld [vmem:[%s2 + $0x8] sm:$0xff]
    %v731 = vsel %vm728, 0.0, -1e+30
    %v733 = vlaneseq
    %v734 = vshrl.u32 %v733, 7
    %v735 = vsub.s32 0, %v734
    %v736 = vrot.slane %v731, %v735
    %v738 = vadd.f32 %v729, %v736
    %v739 = vadd.f32 %v730, %v736
    %v740 = vpack.c.bf16 %v445, %v444
    %v741 = vld [vmem:[%s7] sm:$0xf]
    %v742 = vld [vmem:[%s7 + $0x4] sm:$0xf]
    %v743 = vld [vmem:[%s7 + $0x8] sm:$0xf]
    %v744 = vld [vmem:[%s7 + $0xc] sm:$0xf]
    %v749 = vunpack.c.l.b16 %v741
    %v750 = vunpack.c.l.b16 %v742
    %v751 = vunpack.c.l.b16 %v743
    %v752 = vunpack.c.l.b16 %v744
    %v753 = vpack.c.b16 %v750, %v749
    %v754 = vpack.c.b16 %v752, %v751
    %vm757 = vcmask 261120
    %v759 = vsel %vm757, %v740, 0
    %761 = vmatprep.subr.bf16.mxu0 0
    %762 = vmatpush1.bf16.msra.mxu0 %v753
    %763 = vmatprep.subr.bf16.mxu0 0
    %764 = vmatpush1.bf16.msra.mxu0 %v754
    %765 = vmatprep.subr.bf16.mxu0 0
    %766 = vmatpush1.bf16.msra.mxu0 0
    %767 = vmatprep.subr.bf16.mxu0 0
    %768 = vmatpush1.bf16.msra.mxu0 0
    %769 = vmatprep.subr.bf16.mxu0 0
    %770 = vmatpush1.bf16.msra.mxu0 0
    %771 = vmatprep.subr.bf16.mxu0 0
    %772 = vmatpush1.bf16.msra.mxu0 0
    %773 = vmatprep.subr.bf16.mxu0 0
    %774 = vmatpush1.bf16.msra.mxu0 0
    %775 = vmatprep.subr.bf16.mxu0 0
    %776 = vmatpush1.bf16.msra.mxu0 0
    %777 = vmatprep.subr.bf16.mxu0 0
    %778 = vmatpush1.bf16.msra.mxu0 0
    %779 = vmatprep.subr.bf16.mxu0 0
    %780 = vmatpush1.bf16.msra.mxu0 0
    %781 = vmatprep.subr.bf16.mxu0 0
    %782 = vmatpush1.bf16.msra.mxu0 0
    %783 = vmatprep.subr.bf16.mxu0 0
    %784 = vmatpush1.bf16.msra.mxu0 0
    %785 = vmatprep.subr.bf16.mxu0 0
    %786 = vmatpush1.bf16.msra.mxu0 0
    %787 = vmatprep.subr.bf16.mxu0 0
    %788 = vmatpush1.bf16.msra.mxu0 0
    %789 = vmatprep.subr.bf16.mxu0 0
    %790 = vmatpush1.bf16.msra.mxu0 0
    %791 = vmatprep.subr.bf16.mxu0 0
    %792 = vmatpush1.bf16.msra.mxu0 0
    %793 = vmatprep.mubr.bf16.mxu0 0
    %794 = vmatmul.mubr.bf16.gmra.mrb[0].mxu0 %v759
    %v795 = vpop.f32.mrb[0].mxu0
    %v796 = vadd.f32 0.0, %v795
    %v797 = vpop.f32.mrb[0].mxu0
    %v798 = vpop.f32.mrb[0].mxu0
    %v799 = vadd.f32 0.0, %v798
    %v800 = vpop.f32.mrb[0].mxu0
    %801 = vdwg.mxu0
    %v802 = vld [vmem:[%s8] sm:$0xf]
    %v803 = vld [vmem:[%s8 + $0x4] sm:$0xf]
    %v804 = vld [vmem:[%s8 + $0x8] sm:$0xf]
    %v805 = vld [vmem:[%s8 + $0xc] sm:$0xf]
    %v810 = vunpack.c.l.b16 %v802
    %v811 = vunpack.c.l.b16 %v803
    %v812 = vunpack.c.l.b16 %v804
    %v813 = vunpack.c.l.b16 %v805
    %v814 = vpack.c.b16 %v811, %v810
    %v815 = vpack.c.b16 %v813, %v812
    %818 = vmatprep.subr.bf16.mxu0 0
    %819 = vmatpush1.bf16.msra.mxu0 %v814
    %820 = vmatprep.subr.bf16.mxu0 0
    %821 = vmatpush1.bf16.msra.mxu0 %v815
    %822 = vmatprep.subr.bf16.mxu0 0
    %823 = vmatpush1.bf16.msra.mxu0 0
    %824 = vmatprep.subr.bf16.mxu0 0
    %825 = vmatpush1.bf16.msra.mxu0 0
    %826 = vmatprep.subr.bf16.mxu0 0
    %827 = vmatpush1.bf16.msra.mxu0 0
    %828 = vmatprep.subr.bf16.mxu0 0
    %829 = vmatpush1.bf16.msra.mxu0 0
    %830 = vmatprep.subr.bf16.mxu0 0
    %831 = vmatpush1.bf16.msra.mxu0 0
    %832 = vmatprep.subr.bf16.mxu0 0
    %833 = vmatpush1.bf16.msra.mxu0 0
    %834 = vmatprep.subr.bf16.mxu0 0
    %835 = vmatpush1.bf16.msra.mxu0 0
    %836 = vmatprep.subr.bf16.mxu0 0
    %837 = vmatpush1.bf16.msra.mxu0 0
    %838 = vmatprep.subr.bf16.mxu0 0
    %839 = vmatpush1.bf16.msra.mxu0 0
    %840 = vmatprep.subr.bf16.mxu0 0
    %841 = vmatpush1.bf16.msra.mxu0 0
    %842 = vmatprep.subr.bf16.mxu0 0
    %843 = vmatpush1.bf16.msra.mxu0 0
    %844 = vmatprep.subr.bf16.mxu0 0
    %845 = vmatpush1.bf16.msra.mxu0 0
    %846 = vmatprep.subr.bf16.mxu0 0
    %847 = vmatpush1.bf16.msra.mxu0 0
    %848 = vmatprep.subr.bf16.mxu0 0
    %849 = vmatpush1.bf16.msra.mxu0 0
    %850 = vmatprep.mubr.bf16.mxu0 0
    %851 = vmatmul.mubr.bf16.gmra.mrb[0].mxu0 %v759
    %v852 = vpop.f32.mrb[0].mxu0
    %v853 = vadd.f32 0.0, %v852
    %v854 = vpop.f32.mrb[0].mxu0
    %v855 = vpop.f32.mrb[0].mxu0
    %v856 = vadd.f32 0.0, %v855
    %v857 = vpop.f32.mrb[0].mxu0
    %858 = vdwg.mxu0
    %v859 = vld [vmem:[%s9] sm:$0xf]
    %v860 = vld [vmem:[%s9 + $0x4] sm:$0xf]
    %v861 = vld [vmem:[%s9 + $0x8] sm:$0xf]
    %v862 = vld [vmem:[%s9 + $0xc] sm:$0xf]
    %v867 = vunpack.c.l.b16 %v859
    %v868 = vunpack.c.l.b16 %v860
    %v869 = vunpack.c.l.b16 %v861
    %v870 = vunpack.c.l.b16 %v862
    %v871 = vpack.c.b16 %v868, %v867
    %v872 = vpack.c.b16 %v870, %v869
    %875 = vmatprep.subr.bf16.mxu0 0
    %876 = vmatpush1.bf16.msra.mxu0 %v871
    %877 = vmatprep.subr.bf16.mxu0 0
    %878 = vmatpush1.bf16.msra.mxu0 %v872
    %879 = vmatprep.subr.bf16.mxu0 0
    %880 = vmatpush1.bf16.msra.mxu0 0
    %881 = vmatprep.subr.bf16.mxu0 0
    %882 = vmatpush1.bf16.msra.mxu0 0
    %883 = vmatprep.subr.bf16.mxu0 0
    %884 = vmatpush1.bf16.msra.mxu0 0
    %885 = vmatprep.subr.bf16.mxu0 0
    %886 = vmatpush1.bf16.msra.mxu0 0
    %887 = vmatprep.subr.bf16.mxu0 0
    %888 = vmatpush1.bf16.msra.mxu0 0
    %889 = vmatprep.subr.bf16.mxu0 0
    %890 = vmatpush1.bf16.msra.mxu0 0
    %891 = vmatprep.subr.bf16.mxu0 0
    %892 = vmatpush1.bf16.msra.mxu0 0
    %893 = vmatprep.subr.bf16.mxu0 0
    %894 = vmatpush1.bf16.msra.mxu0 0
    %895 = vmatprep.subr.bf16.mxu0 0
    %896 = vmatpush1.bf16.msra.mxu0 0
    %897 = vmatprep.subr.bf16.mxu0 0
    %898 = vmatpush1.bf16.msra.mxu0 0
    %899 = vmatprep.subr.bf16.mxu0 0
    %900 = vmatpush1.bf16.msra.mxu0 0
    %901 = vmatprep.subr.bf16.mxu0 0
    %902 = vmatpush1.bf16.msra.mxu0 0
    %903 = vmatprep.subr.bf16.mxu0 0
    %904 = vmatpush1.bf16.msra.mxu0 0
    %905 = vmatprep.subr.bf16.mxu0 0
    %906 = vmatpush1.bf16.msra.mxu0 0
    %907 = vmatprep.mubr.bf16.mxu0 0
    %908 = vmatmul.mubr.bf16.gmra.mrb[0].mxu0 %v759
    %v909 = vpop.f32.mrb[0].mxu0
    %v910 = vadd.f32 0.0, %v909
    %v911 = vpop.f32.mrb[0].mxu0
    %v912 = vpop.f32.mrb[0].mxu0
    %v913 = vadd.f32 0.0, %v912
    %v914 = vpop.f32.mrb[0].mxu0
    %915 = vdwg.mxu0
    %v916 = vpack.c.bf16 %v799, %v796
    %v917 = vpack.c.bf16 %v856, %v853
    %v919 = vsel %vm757, %v916, 0
    %v922 = vsel %vm757, %v917, 0
    %924 = vmatprep.subr.bf16.mxu0 0
    %925 = vmatpush1.bf16.xpose.msra.mxu0 %v922
    %926 = vmatprep.subr.bf16.mxu0 0
    %927 = vmatpush1.bf16.xpose.msra.mxu0 0
    %928 = vmatprep.subr.bf16.mxu0 0
    %929 = vmatpush1.bf16.xpose.msra.mxu0 0
    %930 = vmatprep.subr.bf16.mxu0 0
    %931 = vmatpush1.bf16.xpose.msra.mxu0 0
    %932 = vmatprep.subr.bf16.mxu0 0
    %933 = vmatpush1.bf16.xpose.msra.mxu0 0
    %934 = vmatprep.subr.bf16.mxu0 0
    %935 = vmatpush1.bf16.xpose.msra.mxu0 0
    %936 = vmatprep.subr.bf16.mxu0 0
    %937 = vmatpush1.bf16.xpose.msra.mxu0 0
    %938 = vmatprep.subr.bf16.mxu0 0
    %939 = vmatpush1.bf16.xpose.msra.mxu0 0
    %940 = vmatprep.subr.bf16.mxu0 0
    %941 = vmatpush1.bf16.xpose.msra.mxu0 0
    %942 = vmatprep.subr.bf16.mxu0 0
    %943 = vmatpush1.bf16.xpose.msra.mxu0 0
    %944 = vmatprep.subr.bf16.mxu0 0
    %945 = vmatpush1.bf16.xpose.msra.mxu0 0
    %946 = vmatprep.subr.bf16.mxu0 0
    %947 = vmatpush1.bf16.xpose.msra.mxu0 0
    %948 = vmatprep.subr.bf16.mxu0 0
    %949 = vmatpush1.bf16.xpose.msra.mxu0 0
    %950 = vmatprep.subr.bf16.mxu0 0
    %951 = vmatpush1.bf16.xpose.msra.mxu0 0
    %952 = vmatprep.subr.bf16.mxu0 0
    %953 = vmatpush1.bf16.xpose.msra.mxu0 0
    %954 = vmatprep.subr.bf16.mxu0 0
    %955 = vmatpush1.bf16.xpose.msra.mxu0 0
    %956 = vmatprep.mubr.bf16.mxu0 0
    %957 = vmatmul.mubr.bf16.gmra.mrb[0].mxu0 %v919
    %v958 = vpop.f32.mrb[0].mxu0
    %v959 = vadd.f32 0.0, %v958
    %v960 = vpop.f32.mrb[0].mxu0
    %v961 = vpop.f32.mrb[0].mxu0
    %v962 = vadd.f32 0.0, %v961
    %v963 = vpop.f32.mrb[0].mxu0
    %964 = vdwg.mxu0
    %v965 = vmul.f32 %v959, 0.17677669
    %v966 = vmul.f32 %v962, 0.17677669
    %v967 = vadd.f32 %v965, %v738
    %v968 = vadd.f32 %v966, %v739
    %v969 = vsel %vm362, %v967, -inf
    %970 = vmax.xlane.f32.xlu0 %v969
    %v971 = vpop.xlane.xlu0 %970
    %v972 = vsel %vm362, %v968, -inf
    %973 = vmax.xlane.f32.xlu0 %v972
    %v974 = vpop.xlane.xlu0 %973
    %v975 = vsub.f32 %v967, %v971
    %v976 = vsub.f32 %v968, %v974
    %v977 = vmul.f32 %v975, 1.442695
    %v978 = vpow.pop %v977
    %v979 = vmul.f32 %v976, 1.442695
    %v980 = vpow.pop %v979
    %v981 = vsel %vm362, %v978, 0.0
    %982 = vadd.xlane.f32.xlu0 %v981
    %v983 = vpop.xlane.xlu0 %982
    %v984 = vsel %vm362, %v980, 0.0
    %985 = vadd.xlane.f32.xlu0 %v984
    %v986 = vpop.xlane.xlu0 %985
    %v987 = vrcp.pop %v983
    %v988 = vmul.f32 %v978, %v987
    %v989 = vrcp.pop %v986
    %v990 = vmul.f32 %v980, %v989
    %v991 = vpack.c.bf16 %v990, %v988
    %v992 = vpack.c.bf16 %v913, %v910
    %v994 = vsel %vm362, %v991, 0
    %996 = vmatprep.subr.bf16.mxu0 0
    %997 = vmatpush1.bf16.msra.mxu0 %v992
    %998 = vmatprep.subr.bf16.mxu0 0
    %999 = vmatpush1.bf16.msra.mxu0 0
    %1000 = vmatprep.subr.bf16.mxu0 0
    %1001 = vmatpush1.bf16.msra.mxu0 0
    %1002 = vmatprep.subr.bf16.mxu0 0
    %1003 = vmatpush1.bf16.msra.mxu0 0
    %1004 = vmatprep.subr.bf16.mxu0 0
    %1005 = vmatpush1.bf16.msra.mxu0 0
    %1006 = vmatprep.subr.bf16.mxu0 0
    %1007 = vmatpush1.bf16.msra.mxu0 0
    %1008 = vmatprep.subr.bf16.mxu0 0
    %1009 = vmatpush1.bf16.msra.mxu0 0
    %1010 = vmatprep.subr.bf16.mxu0 0
    %1011 = vmatpush1.bf16.msra.mxu0 0
    %1012 = vmatprep.subr.bf16.mxu0 0
    %1013 = vmatpush1.bf16.msra.mxu0 0
    %1014 = vmatprep.subr.bf16.mxu0 0
    %1015 = vmatpush1.bf16.msra.mxu0 0
    %1016 = vmatprep.subr.bf16.mxu0 0
    %1017 = vmatpush1.bf16.msra.mxu0 0
    %1018 = vmatprep.subr.bf16.mxu0 0
    %1019 = vmatpush1.bf16.msra.mxu0 0
    %1020 = vmatprep.subr.bf16.mxu0 0
    %1021 = vmatpush1.bf16.msra.mxu0 0
    %1022 = vmatprep.subr.bf16.mxu0 0
    %1023 = vmatpush1.bf16.msra.mxu0 0
    %1024 = vmatprep.subr.bf16.mxu0 0
    %1025 = vmatpush1.bf16.msra.mxu0 0
    %1026 = vmatprep.subr.bf16.mxu0 0
    %1027 = vmatpush1.bf16.msra.mxu0 0
    %1028 = vmatprep.mubr.bf16.mxu0 0
    %1029 = vmatmul.mubr.bf16.gmra.mrb[0].mxu0 %v994
    %v1030 = vpop.f32.mrb[0].mxu0
    %v1031 = vadd.f32 0.0, %v1030
    %v1032 = vpop.f32.mrb[0].mxu0
    %v1033 = vpop.f32.mrb[0].mxu0
    %v1034 = vadd.f32 0.0, %v1033
    %v1035 = vpop.f32.mrb[0].mxu0
    %1036 = vdwg.mxu0
    %v1037 = vpack.c.bf16 %v1034, %v1031
    %v1038 = vld [vmem:[%s10] sm:$0xf]
    %v1039 = vld [vmem:[%s10 + $0x4] sm:$0xf]
    %v1040 = vld [vmem:[%s10 + $0x8] sm:$0xf]
    %v1041 = vld [vmem:[%s10 + $0xc] sm:$0xf]
    %v1046 = vunpack.c.l.b16 %v1038
    %v1047 = vunpack.c.l.b16 %v1039
    %v1048 = vunpack.c.l.b16 %v1040
    %v1049 = vunpack.c.l.b16 %v1041
    %v1050 = vpack.c.b16 %v1047, %v1046
    %v1051 = vpack.c.b16 %v1049, %v1048
    %v1055 = vsel %vm757, %v1037, 0
    %1057 = vmatprep.subr.bf16.mxu0 0
    %1058 = vmatpush1.bf16.msra.mxu0 %v1050
    %1059 = vmatprep.subr.bf16.mxu0 0
    %1060 = vmatpush1.bf16.msra.mxu0 %v1051
    %1061 = vmatprep.subr.bf16.mxu0 0
    %1062 = vmatpush1.bf16.msra.mxu0 0
    %1063 = vmatprep.subr.bf16.mxu0 0
    %1064 = vmatpush1.bf16.msra.mxu0 0
    %1065 = vmatprep.subr.bf16.mxu0 0
    %1066 = vmatpush1.bf16.msra.mxu0 0
    %1067 = vmatprep.subr.bf16.mxu0 0
    %1068 = vmatpush1.bf16.msra.mxu0 0
    %1069 = vmatprep.subr.bf16.mxu0 0
    %1070 = vmatpush1.bf16.msra.mxu0 0
    %1071 = vmatprep.subr.bf16.mxu0 0
    %1072 = vmatpush1.bf16.msra.mxu0 0
    %1073 = vmatprep.subr.bf16.mxu0 0
    %1074 = vmatpush1.bf16.msra.mxu0 0
    %1075 = vmatprep.subr.bf16.mxu0 0
    %1076 = vmatpush1.bf16.msra.mxu0 0
    %1077 = vmatprep.subr.bf16.mxu0 0
    %1078 = vmatpush1.bf16.msra.mxu0 0
    %1079 = vmatprep.subr.bf16.mxu0 0
    %1080 = vmatpush1.bf16.msra.mxu0 0
    %1081 = vmatprep.subr.bf16.mxu0 0
    %1082 = vmatpush1.bf16.msra.mxu0 0
    %1083 = vmatprep.subr.bf16.mxu0 0
    %1084 = vmatpush1.bf16.msra.mxu0 0
    %1085 = vmatprep.subr.bf16.mxu0 0
    %1086 = vmatpush1.bf16.msra.mxu0 0
    %1087 = vmatprep.subr.bf16.mxu0 0
    %1088 = vmatpush1.bf16.msra.mxu0 0
    %1089 = vmatprep.mubr.bf16.mxu0 0
    %1090 = vmatmul.mubr.bf16.gmra.mrb[0].mxu0 %v1055
    %v1091 = vpop.f32.mrb[0].mxu0
    %v1092 = vadd.f32 %v444, %v1091
    %v1093 = vpop.f32.mrb[0].mxu0
    %v1094 = vpop.f32.mrb[0].mxu0
    %v1095 = vadd.f32 %v445, %v1094
    %v1096 = vpop.f32.mrb[0].mxu0
    %1097 = vdwg.mxu0
    %v1098 = vpack.c.bf16 %v1095, %v1092
    %v1099 = vld [vmem:[%s11] sm:$0xf]
    %v1100 = vld [vmem:[%s11 + $0x4] sm:$0xf]
    %v1101 = vld [vmem:[%s11 + $0x8] sm:$0xf]
    %v1102 = vld [vmem:[%s11 + $0xc] sm:$0xf]
    %v1107 = vunpack.c.l.b16 %v1099
    %v1108 = vunpack.c.l.b16 %v1100
    %v1109 = vunpack.c.l.b16 %v1101
    %v1110 = vunpack.c.l.b16 %v1102
    %v1111 = vpack.c.b16 %v1108, %v1107
    %v1112 = vpack.c.b16 %v1110, %v1109
    %v1116 = vsel %vm757, %v1098, 0
    %1118 = vmatprep.subr.bf16.mxu0 0
    %1119 = vmatpush1.bf16.msra.mxu0 %v1111
    %1120 = vmatprep.subr.bf16.mxu0 0
    %1121 = vmatpush1.bf16.msra.mxu0 %v1112
    %1122 = vmatprep.subr.bf16.mxu0 0
    %1123 = vmatpush1.bf16.msra.mxu0 0
    %1124 = vmatprep.subr.bf16.mxu0 0
    %1125 = vmatpush1.bf16.msra.mxu0 0
    %1126 = vmatprep.subr.bf16.mxu0 0
    %1127 = vmatpush1.bf16.msra.mxu0 0
    %1128 = vmatprep.subr.bf16.mxu0 0
    %1129 = vmatpush1.bf16.msra.mxu0 0
    %1130 = vmatprep.subr.bf16.mxu0 0
    %1131 = vmatpush1.bf16.msra.mxu0 0
    %1132 = vmatprep.subr.bf16.mxu0 0
    %1133 = vmatpush1.bf16.msra.mxu0 0
    %1134 = vmatprep.subr.bf16.mxu0 0
    %1135 = vmatpush1.bf16.msra.mxu0 0
    %1136 = vmatprep.subr.bf16.mxu0 0
    %1137 = vmatpush1.bf16.msra.mxu0 0
    %1138 = vmatprep.subr.bf16.mxu0 0
    %1139 = vmatpush1.bf16.msra.mxu0 0
    %1140 = vmatprep.subr.bf16.mxu0 0
    %1141 = vmatpush1.bf16.msra.mxu0 0
    %1142 = vmatprep.subr.bf16.mxu0 0
    %1143 = vmatpush1.bf16.msra.mxu0 0
    %1144 = vmatprep.subr.bf16.mxu0 0
    %1145 = vmatpush1.bf16.msra.mxu0 0
    %1146 = vmatprep.subr.bf16.mxu0 0
    %1147 = vmatpush1.bf16.msra.mxu0 0
    %1148 = vmatprep.subr.bf16.mxu0 0
    %1149 = vmatpush1.bf16.msra.mxu0 0
    %1150 = vmatprep.mubr.bf16.mxu0 0
    %1151 = vmatmul.mubr.bf16.gmra.mrb[0].mxu0 %v1116
    %v1152 = vpop.f32.mrb[0].mxu0
    %v1153 = vadd.f32 0.0, %v1152
    %v1154 = vpop.f32.mrb[0].mxu0
    %v1155 = vpop.f32.mrb[0].mxu0
    %v1156 = vadd.f32 0.0, %v1155
    %v1157 = vpop.f32.mrb[0].mxu0
    %1158 = vdwg.mxu0
    %v1159 = vmax.f32 %v1153, 0.0
    %v1160 = vmax.f32 %v1156, 0.0
    %v1161 = vpack.c.bf16 %v1160, %v1159
    %v1162 = vld [vmem:[%s12] sm:$0xf]
    %v1163 = vld [vmem:[%s12 + $0x4] sm:$0xf]
    %v1164 = vld [vmem:[%s12 + $0x8] sm:$0xf]
    %v1165 = vld [vmem:[%s12 + $0xc] sm:$0xf]
    %v1166 = vld [vmem:[%s12 + $0x10] sm:$0xf]
    %v1167 = vld [vmem:[%s12 + $0x14] sm:$0xf]
    %v1168 = vld [vmem:[%s12 + $0x18] sm:$0xf]
    %v1169 = vld [vmem:[%s12 + $0x1c] sm:$0xf]
    %v1178 = vunpack.c.l.b16 %v1162
    %v1179 = vunpack.c.l.b16 %v1163
    %v1180 = vunpack.c.l.b16 %v1164
    %v1181 = vunpack.c.l.b16 %v1165
    %v1182 = vunpack.c.l.b16 %v1166
    %v1183 = vunpack.c.l.b16 %v1167
    %v1184 = vunpack.c.l.b16 %v1168
    %v1185 = vunpack.c.l.b16 %v1169
    %v1186 = vpack.c.b16 %v1179, %v1178
    %v1187 = vpack.c.b16 %v1181, %v1180
    %v1188 = vpack.c.b16 %v1183, %v1182
    %v1189 = vpack.c.b16 %v1185, %v1184
    %v1195 = vsel %vm169, %v1161, 0
    %1197 = vmatprep.subr.bf16.mxu0 0
    %1198 = vmatpush1.bf16.msra.mxu0 %v1186
    %1199 = vmatprep.subr.bf16.mxu0 0
    %1200 = vmatpush1.bf16.msra.mxu0 %v1187
    %1201 = vmatprep.subr.bf16.mxu0 0
    %1202 = vmatpush1.bf16.msra.mxu0 %v1188
    %1203 = vmatprep.subr.bf16.mxu0 0
    %1204 = vmatpush1.bf16.msra.mxu0 %v1189
    %1205 = vmatprep.subr.bf16.mxu0 0
    %1206 = vmatpush1.bf16.msra.mxu0 0
    %1207 = vmatprep.subr.bf16.mxu0 0
    %1208 = vmatpush1.bf16.msra.mxu0 0
    %1209 = vmatprep.subr.bf16.mxu0 0
    %1210 = vmatpush1.bf16.msra.mxu0 0
    %1211 = vmatprep.subr.bf16.mxu0 0
    %1212 = vmatpush1.bf16.msra.mxu0 0
    %1213 = vmatprep.subr.bf16.mxu0 0
    %1214 = vmatpush1.bf16.msra.mxu0 0
    %1215 = vmatprep.subr.bf16.mxu0 0
    %1216 = vmatpush1.bf16.msra.mxu0 0
    %1217 = vmatprep.subr.bf16.mxu0 0
    %1218 = vmatpush1.bf16.msra.mxu0 0
    %1219 = vmatprep.subr.bf16.mxu0 0
    %1220 = vmatpush1.bf16.msra.mxu0 0
    %1221 = vmatprep.subr.bf16.mxu0 0
    %1222 = vmatpush1.bf16.msra.mxu0 0
    %1223 = vmatprep.subr.bf16.mxu0 0
    %1224 = vmatpush1.bf16.msra.mxu0 0
    %1225 = vmatprep.subr.bf16.mxu0 0
    %1226 = vmatpush1.bf16.msra.mxu0 0
    %1227 = vmatprep.subr.bf16.mxu0 0
    %1228 = vmatpush1.bf16.msra.mxu0 0
    %1229 = vmatprep.mubr.bf16.mxu0 0
    %1230 = vmatmul.mubr.bf16.gmra.mrb[0].mxu0 %v1195
    %v1231 = vpop.f32.mrb[0].mxu0
    %v1232 = vadd.f32 %v1092, %v1231
    %v1233 = vpop.f32.mrb[0].mxu0
    %v1234 = vpop.f32.mrb[0].mxu0
    %v1235 = vadd.f32 %v1095, %v1234
    %v1236 = vpop.f32.mrb[0].mxu0
    %1237 = vdwg.mxu0
    %v1238 = vpack.c.bf16 %v726, %v725
    %s1239 = scalar_lea.vmem %s7, 16
    %v1240 = vld [vmem:[%s1239] sm:$0xf]
    %v1241 = vld [vmem:[%s1239 + $0x4] sm:$0xf]
    %v1242 = vld [vmem:[%s1239 + $0x8] sm:$0xf]
    %v1243 = vld [vmem:[%s1239 + $0xc] sm:$0xf]
    %v1248 = vunpack.c.l.b16 %v1240
    %v1249 = vunpack.c.l.b16 %v1241
    %v1250 = vunpack.c.l.b16 %v1242
    %v1251 = vunpack.c.l.b16 %v1243
    %v1252 = vpack.c.b16 %v1249, %v1248
    %v1253 = vpack.c.b16 %v1251, %v1250
    %v1257 = vsel %vm757, %v1238, 0
    %1259 = vmatprep.subr.bf16.mxu0 0
    %1260 = vmatpush1.bf16.msra.mxu0 %v1252
    %1261 = vmatprep.subr.bf16.mxu0 0
    %1262 = vmatpush1.bf16.msra.mxu0 %v1253
    %1263 = vmatprep.subr.bf16.mxu0 0
    %1264 = vmatpush1.bf16.msra.mxu0 0
    %1265 = vmatprep.subr.bf16.mxu0 0
    %1266 = vmatpush1.bf16.msra.mxu0 0
    %1267 = vmatprep.subr.bf16.mxu0 0
    %1268 = vmatpush1.bf16.msra.mxu0 0
    %1269 = vmatprep.subr.bf16.mxu0 0
    %1270 = vmatpush1.bf16.msra.mxu0 0
    %1271 = vmatprep.subr.bf16.mxu0 0
    %1272 = vmatpush1.bf16.msra.mxu0 0
    %1273 = vmatprep.subr.bf16.mxu0 0
    %1274 = vmatpush1.bf16.msra.mxu0 0
    %1275 = vmatprep.subr.bf16.mxu0 0
    %1276 = vmatpush1.bf16.msra.mxu0 0
    %1277 = vmatprep.subr.bf16.mxu0 0
    %1278 = vmatpush1.bf16.msra.mxu0 0
    %1279 = vmatprep.subr.bf16.mxu0 0
    %1280 = vmatpush1.bf16.msra.mxu0 0
    %1281 = vmatprep.subr.bf16.mxu0 0
    %1282 = vmatpush1.bf16.msra.mxu0 0
    %1283 = vmatprep.subr.bf16.mxu0 0
    %1284 = vmatpush1.bf16.msra.mxu0 0
    %1285 = vmatprep.subr.bf16.mxu0 0
    %1286 = vmatpush1.bf16.msra.mxu0 0
    %1287 = vmatprep.subr.bf16.mxu0 0
    %1288 = vmatpush1.bf16.msra.mxu0 0
    %1289 = vmatprep.subr.bf16.mxu0 0
    %1290 = vmatpush1.bf16.msra.mxu0 0
    %1291 = vmatprep.mubr.bf16.mxu0 0
    %1292 = vmatmul.mubr.bf16.gmra.mrb[0].mxu0 %v1257
    %v1293 = vpop.f32.mrb[0].mxu0
    %v1294 = vadd.f32 0.0, %v1293
    %v1295 = vpop.f32.mrb[0].mxu0
    %v1296 = vpop.f32.mrb[0].mxu0
    %v1297 = vadd.f32 0.0, %v1296
    %v1298 = vpop.f32.mrb[0].mxu0
    %1299 = vdwg.mxu0
    %s1300 = scalar_lea.vmem %s8, 16
    %v1301 = vld [vmem:[%s1300] sm:$0xf]
    %v1302 = vld [vmem:[%s1300 + $0x4] sm:$0xf]
    %v1303 = vld [vmem:[%s1300 + $0x8] sm:$0xf]
    %v1304 = vld [vmem:[%s1300 + $0xc] sm:$0xf]
    %v1309 = vunpack.c.l.b16 %v1301
    %v1310 = vunpack.c.l.b16 %v1302
    %v1311 = vunpack.c.l.b16 %v1303
    %v1312 = vunpack.c.l.b16 %v1304
    %v1313 = vpack.c.b16 %v1310, %v1309
    %v1314 = vpack.c.b16 %v1312, %v1311
    %1317 = vmatprep.subr.bf16.mxu0 0
    %1318 = vmatpush1.bf16.msra.mxu0 %v1313
    %1319 = vmatprep.subr.bf16.mxu0 0
    %1320 = vmatpush1.bf16.msra.mxu0 %v1314
    %1321 = vmatprep.subr.bf16.mxu0 0
    %1322 = vmatpush1.bf16.msra.mxu0 0
    %1323 = vmatprep.subr.bf16.mxu0 0
    %1324 = vmatpush1.bf16.msra.mxu0 0
    %1325 = vmatprep.subr.bf16.mxu0 0
    %1326 = vmatpush1.bf16.msra.mxu0 0
    %1327 = vmatprep.subr.bf16.mxu0 0
    %1328 = vmatpush1.bf16.msra.mxu0 0
    %1329 = vmatprep.subr.bf16.mxu0 0
    %1330 = vmatpush1.bf16.msra.mxu0 0
    %1331 = vmatprep.subr.bf16.mxu0 0
    %1332 = vmatpush1.bf16.msra.mxu0 0
    %1333 = vmatprep.subr.bf16.mxu0 0
    %1334 = vmatpush1.bf16.msra.mxu0 0
    %1335 = vmatprep.subr.bf16.mxu0 0
    %1336 = vmatpush1.bf16.msra.mxu0 0
    %1337 = vmatprep.subr.bf16.mxu0 0
    %1338 = vmatpush1.bf16.msra.mxu0 0
    %1339 = vmatprep.subr.bf16.mxu0 0
    %1340 = vmatpush1.bf16.msra.mxu0 0
    %1341 = vmatprep.subr.bf16.mxu0 0
    %1342 = vmatpush1.bf16.msra.mxu0 0
    %1343 = vmatprep.subr.bf16.mxu0 0
    %1344 = vmatpush1.bf16.msra.mxu0 0
    %1345 = vmatprep.subr.bf16.mxu0 0
    %1346 = vmatpush1.bf16.msra.mxu0 0
    %1347 = vmatprep.subr.bf16.mxu0 0
    %1348 = vmatpush1.bf16.msra.mxu0 0
    %1349 = vmatprep.mubr.bf16.mxu0 0
    %1350 = vmatmul.mubr.bf16.gmra.mrb[0].mxu0 %v1257
    %v1351 = vpop.f32.mrb[0].mxu0
    %v1352 = vadd.f32 0.0, %v1351
    %v1353 = vpop.f32.mrb[0].mxu0
    %v1354 = vpop.f32.mrb[0].mxu0
    %v1355 = vadd.f32 0.0, %v1354
    %v1356 = vpop.f32.mrb[0].mxu0
    %1357 = vdwg.mxu0
    %s1358 = scalar_lea.vmem %s9, 16
    %v1359 = vld [vmem:[%s1358] sm:$0xf]
    %v1360 = vld [vmem:[%s1358 + $0x4] sm:$0xf]
    %v1361 = vld [vmem:[%s1358 + $0x8] sm:$0xf]
    %v1362 = vld [vmem:[%s1358 + $0xc] sm:$0xf]
    %v1367 = vunpack.c.l.b16 %v1359
    %v1368 = vunpack.c.l.b16 %v1360
    %v1369 = vunpack.c.l.b16 %v1361
    %v1370 = vunpack.c.l.b16 %v1362
    %v1371 = vpack.c.b16 %v1368, %v1367
    %v1372 = vpack.c.b16 %v1370, %v1369
    %1375 = vmatprep.subr.bf16.mxu0 0
    %1376 = vmatpush1.bf16.msra.mxu0 %v1371
    %1377 = vmatprep.subr.bf16.mxu0 0
    %1378 = vmatpush1.bf16.msra.mxu0 %v1372
    %1379 = vmatprep.subr.bf16.mxu0 0
    %1380 = vmatpush1.bf16.msra.mxu0 0
    %1381 = vmatprep.subr.bf16.mxu0 0
    %1382 = vmatpush1.bf16.msra.mxu0 0
    %1383 = vmatprep.subr.bf16.mxu0 0
    %1384 = vmatpush1.bf16.msra.mxu0 0
    %1385 = vmatprep.subr.bf16.mxu0 0
    %1386 = vmatpush1.bf16.msra.mxu0 0
    %1387 = vmatprep.subr.bf16.mxu0 0
    %1388 = vmatpush1.bf16.msra.mxu0 0
    %1389 = vmatprep.subr.bf16.mxu0 0
    %1390 = vmatpush1.bf16.msra.mxu0 0
    %1391 = vmatprep.subr.bf16.mxu0 0
    %1392 = vmatpush1.bf16.msra.mxu0 0
    %1393 = vmatprep.subr.bf16.mxu0 0
    %1394 = vmatpush1.bf16.msra.mxu0 0
    %1395 = vmatprep.subr.bf16.mxu0 0
    %1396 = vmatpush1.bf16.msra.mxu0 0
    %1397 = vmatprep.subr.bf16.mxu0 0
    %1398 = vmatpush1.bf16.msra.mxu0 0
    %1399 = vmatprep.subr.bf16.mxu0 0
    %1400 = vmatpush1.bf16.msra.mxu0 0
    %1401 = vmatprep.subr.bf16.mxu0 0
    %1402 = vmatpush1.bf16.msra.mxu0 0
    %1403 = vmatprep.subr.bf16.mxu0 0
    %1404 = vmatpush1.bf16.msra.mxu0 0
    %1405 = vmatprep.subr.bf16.mxu0 0
    %1406 = vmatpush1.bf16.msra.mxu0 0
    %1407 = vmatprep.mubr.bf16.mxu0 0
    %1408 = vmatmul.mubr.bf16.gmra.mrb[0].mxu0 %v1257
    %v1409 = vpop.f32.mrb[0].mxu0
    %v1410 = vadd.f32 0.0, %v1409
    %v1411 = vpop.f32.mrb[0].mxu0
    %v1412 = vpop.f32.mrb[0].mxu0
    %v1413 = vadd.f32 0.0, %v1412
    %v1414 = vpop.f32.mrb[0].mxu0
    %1415 = vdwg.mxu0
    %v1416 = vpack.c.bf16 %v1297, %v1294
    %v1417 = vpack.c.bf16 %v1355, %v1352
    %v1419 = vsel %vm757, %v1416, 0
    %v1422 = vsel %vm757, %v1417, 0
    %1424 = vmatprep.subr.bf16.mxu0 0
    %1425 = vmatpush1.bf16.xpose.msra.mxu0 %v1422
    %1426 = vmatprep.subr.bf16.mxu0 0
    %1427 = vmatpush1.bf16.xpose.msra.mxu0 0
    %1428 = vmatprep.subr.bf16.mxu0 0
    %1429 = vmatpush1.bf16.xpose.msra.mxu0 0
    %1430 = vmatprep.subr.bf16.mxu0 0
    %1431 = vmatpush1.bf16.xpose.msra.mxu0 0
    %1432 = vmatprep.subr.bf16.mxu0 0
    %1433 = vmatpush1.bf16.xpose.msra.mxu0 0
    %1434 = vmatprep.subr.bf16.mxu0 0
    %1435 = vmatpush1.bf16.xpose.msra.mxu0 0
    %1436 = vmatprep.subr.bf16.mxu0 0
    %1437 = vmatpush1.bf16.xpose.msra.mxu0 0
    %1438 = vmatprep.subr.bf16.mxu0 0
    %1439 = vmatpush1.bf16.xpose.msra.mxu0 0
    %1440 = vmatprep.subr.bf16.mxu0 0
    %1441 = vmatpush1.bf16.xpose.msra.mxu0 0
    %1442 = vmatprep.subr.bf16.mxu0 0
    %1443 = vmatpush1.bf16.xpose.msra.mxu0 0
    %1444 = vmatprep.subr.bf16.mxu0 0
    %1445 = vmatpush1.bf16.xpose.msra.mxu0 0
    %1446 = vmatprep.subr.bf16.mxu0 0
    %1447 = vmatpush1.bf16.xpose.msra.mxu0 0
    %1448 = vmatprep.subr.bf16.mxu0 0
    %1449 = vmatpush1.bf16.xpose.msra.mxu0 0
    %1450 = vmatprep.subr.bf16.mxu0 0
    %1451 = vmatpush1.bf16.xpose.msra.mxu0 0
    %1452 = vmatprep.subr.bf16.mxu0 0
    %1453 = vmatpush1.bf16.xpose.msra.mxu0 0
    %1454 = vmatprep.subr.bf16.mxu0 0
    %1455 = vmatpush1.bf16.xpose.msra.mxu0 0
    %1456 = vmatprep.mubr.bf16.mxu0 0
    %1457 = vmatmul.mubr.bf16.gmra.mrb[0].mxu0 %v1419
    %v1458 = vpop.f32.mrb[0].mxu0
    %v1459 = vadd.f32 0.0, %v1458
    %v1460 = vpop.f32.mrb[0].mxu0
    %v1461 = vpop.f32.mrb[0].mxu0
    %v1462 = vadd.f32 0.0, %v1461
    %v1463 = vpop.f32.mrb[0].mxu0
    %1464 = vdwg.mxu0
    %v1465 = vmul.f32 %v1459, 0.17677669
    %v1466 = vmul.f32 %v1462, 0.17677669
    %v1467 = vadd.f32 %v1465, %v738
    %v1468 = vadd.f32 %v1466, %v739
    %v1469 = vsel %vm362, %v1467, -inf
    %1470 = vmax.xlane.f32.xlu0 %v1469
    %v1471 = vpop.xlane.xlu0 %1470
    %v1472 = vsel %vm362, %v1468, -inf
    %1473 = vmax.xlane.f32.xlu0 %v1472
    %v1474 = vpop.xlane.xlu0 %1473
    %v1475 = vsub.f32 %v1467, %v1471
    %v1476 = vsub.f32 %v1468, %v1474
    %v1477 = vmul.f32 %v1475, 1.442695
    %v1478 = vpow.pop %v1477
    %v1479 = vmul.f32 %v1476, 1.442695
    %v1480 = vpow.pop %v1479
    %v1481 = vsel %vm362, %v1478, 0.0
    %1482 = vadd.xlane.f32.xlu0 %v1481
    %v1483 = vpop.xlane.xlu0 %1482
    %v1484 = vsel %vm362, %v1480, 0.0
    %1485 = vadd.xlane.f32.xlu0 %v1484
    %v1486 = vpop.xlane.xlu0 %1485
    %v1487 = vrcp.pop %v1483
    %v1488 = vmul.f32 %v1478, %v1487
    %v1489 = vrcp.pop %v1486
    %v1490 = vmul.f32 %v1480, %v1489
    %v1491 = vpack.c.bf16 %v1490, %v1488
    %v1492 = vpack.c.bf16 %v1413, %v1410
    %v1494 = vsel %vm362, %v1491, 0
    %1496 = vmatprep.subr.bf16.mxu0 0
    %1497 = vmatpush1.bf16.msra.mxu0 %v1492
    %1498 = vmatprep.subr.bf16.mxu0 0
    %1499 = vmatpush1.bf16.msra.mxu0 0
    %1500 = vmatprep.subr.bf16.mxu0 0
    %1501 = vmatpush1.bf16.msra.mxu0 0
    %1502 = vmatprep.subr.bf16.mxu0 0
    %1503 = vmatpush1.bf16.msra.mxu0 0
    %1504 = vmatprep.subr.bf16.mxu0 0
    %1505 = vmatpush1.bf16.msra.mxu0 0
    %1506 = vmatprep.subr.bf16.mxu0 0
    %1507 = vmatpush1.bf16.msra.mxu0 0
    %1508 = vmatprep.subr.bf16.mxu0 0
    %1509 = vmatpush1.bf16.msra.mxu0 0
    %1510 = vmatprep.subr.bf16.mxu0 0
    %1511 = vmatpush1.bf16.msra.mxu0 0
    %1512 = vmatprep.subr.bf16.mxu0 0
    %1513 = vmatpush1.bf16.msra.mxu0 0
    %1514 = vmatprep.subr.bf16.mxu0 0
    %1515 = vmatpush1.bf16.msra.mxu0 0
    %1516 = vmatprep.subr.bf16.mxu0 0
    %1517 = vmatpush1.bf16.msra.mxu0 0
    %1518 = vmatprep.subr.bf16.mxu0 0
    %1519 = vmatpush1.bf16.msra.mxu0 0
    %1520 = vmatprep.subr.bf16.mxu0 0
    %1521 = vmatpush1.bf16.msra.mxu0 0
    %1522 = vmatprep.subr.bf16.mxu0 0
    %1523 = vmatpush1.bf16.msra.mxu0 0
    %1524 = vmatprep.subr.bf16.mxu0 0
    %1525 = vmatpush1.bf16.msra.mxu0 0
    %1526 = vmatprep.subr.bf16.mxu0 0
    %1527 = vmatpush1.bf16.msra.mxu0 0
    %1528 = vmatprep.mubr.bf16.mxu0 0
    %1529 = vmatmul.mubr.bf16.gmra.mrb[0].mxu0 %v1494
    %v1530 = vpop.f32.mrb[0].mxu0
    %v1531 = vadd.f32 0.0, %v1530
    %v1532 = vpop.f32.mrb[0].mxu0
    %v1533 = vpop.f32.mrb[0].mxu0
    %v1534 = vadd.f32 0.0, %v1533
    %v1535 = vpop.f32.mrb[0].mxu0
    %1536 = vdwg.mxu0
    %v1537 = vpack.c.bf16 %v1534, %v1531
    %s1538 = scalar_lea.vmem %s10, 16
    %v1539 = vld [vmem:[%s1538] sm:$0xf]
    %v1540 = vld [vmem:[%s1538 + $0x4] sm:$0xf]
    %v1541 = vld [vmem:[%s1538 + $0x8] sm:$0xf]
    %v1542 = vld [vmem:[%s1538 + $0xc] sm:$0xf]
    %v1547 = vunpack.c.l.b16 %v1539
    %v1548 = vunpack.c.l.b16 %v1540
    %v1549 = vunpack.c.l.b16 %v1541
    %v1550 = vunpack.c.l.b16 %v1542
    %v1551 = vpack.c.b16 %v1548, %v1547
    %v1552 = vpack.c.b16 %v1550, %v1549
    %v1556 = vsel %vm757, %v1537, 0
    %1558 = vmatprep.subr.bf16.mxu0 0
    %1559 = vmatpush1.bf16.msra.mxu0 %v1551
    %1560 = vmatprep.subr.bf16.mxu0 0
    %1561 = vmatpush1.bf16.msra.mxu0 %v1552
    %1562 = vmatprep.subr.bf16.mxu0 0
    %1563 = vmatpush1.bf16.msra.mxu0 0
    %1564 = vmatprep.subr.bf16.mxu0 0
    %1565 = vmatpush1.bf16.msra.mxu0 0
    %1566 = vmatprep.subr.bf16.mxu0 0
    %1567 = vmatpush1.bf16.msra.mxu0 0
    %1568 = vmatprep.subr.bf16.mxu0 0
    %1569 = vmatpush1.bf16.msra.mxu0 0
    %1570 = vmatprep.subr.bf16.mxu0 0
    %1571 = vmatpush1.bf16.msra.mxu0 0
    %1572 = vmatprep.subr.bf16.mxu0 0
    %1573 = vmatpush1.bf16.msra.mxu0 0
    %1574 = vmatprep.subr.bf16.mxu0 0
    %1575 = vmatpush1.bf16.msra.mxu0 0
    %1576 = vmatprep.subr.bf16.mxu0 0
    %1577 = vmatpush1.bf16.msra.mxu0 0
    %1578 = vmatprep.subr.bf16.mxu0 0
    %1579 = vmatpush1.bf16.msra.mxu0 0
    %1580 = vmatprep.subr.bf16.mxu0 0
    %1581 = vmatpush1.bf16.msra.mxu0 0
    %1582 = vmatprep.subr.bf16.mxu0 0
    %1583 = vmatpush1.bf16.msra.mxu0 0
    %1584 = vmatprep.subr.bf16.mxu0 0
    %1585 = vmatpush1.bf16.msra.mxu0 0
    %1586 = vmatprep.subr.bf16.mxu0 0
    %1587 = vmatpush1.bf16.msra.mxu0 0
    %1588 = vmatprep.subr.bf16.mxu0 0
    %1589 = vmatpush1.bf16.msra.mxu0 0
    %1590 = vmatprep.mubr.bf16.mxu0 0
    %1591 = vmatmul.mubr.bf16.gmra.mrb[0].mxu0 %v1556
    %v1592 = vpop.f32.mrb[0].mxu0
    %v1593 = vadd.f32 %v725, %v1592
    %v1594 = vpop.f32.mrb[0].mxu0
    %v1595 = vpop.f32.mrb[0].mxu0
    %v1596 = vadd.f32 %v726, %v1595
    %v1597 = vpop.f32.mrb[0].mxu0
    %1598 = vdwg.mxu0
    %v1599 = vpack.c.bf16 %v1596, %v1593
    %s1600 = scalar_lea.vmem %s11, 16
    %v1601 = vld [vmem:[%s1600] sm:$0xf]
    %v1602 = vld [vmem:[%s1600 + $0x4] sm:$0xf]
    %v1603 = vld [vmem:[%s1600 + $0x8] sm:$0xf]
    %v1604 = vld [vmem:[%s1600 + $0xc] sm:$0xf]
    %v1609 = vunpack.c.l.b16 %v1601
    %v1610 = vunpack.c.l.b16 %v1602
    %v1611 = vunpack.c.l.b16 %v1603
    %v1612 = vunpack.c.l.b16 %v1604
    %v1613 = vpack.c.b16 %v1610, %v1609
    %v1614 = vpack.c.b16 %v1612, %v1611
    %v1618 = vsel %vm757, %v1599, 0
    %1620 = vmatprep.subr.bf16.mxu0 0
    %1621 = vmatpush1.bf16.msra.mxu0 %v1613
    %1622 = vmatprep.subr.bf16.mxu0 0
    %1623 = vmatpush1.bf16.msra.mxu0 %v1614
    %1624 = vmatprep.subr.bf16.mxu0 0
    %1625 = vmatpush1.bf16.msra.mxu0 0
    %1626 = vmatprep.subr.bf16.mxu0 0
    %1627 = vmatpush1.bf16.msra.mxu0 0
    %1628 = vmatprep.subr.bf16.mxu0 0
    %1629 = vmatpush1.bf16.msra.mxu0 0
    %1630 = vmatprep.subr.bf16.mxu0 0
    %1631 = vmatpush1.bf16.msra.mxu0 0
    %1632 = vmatprep.subr.bf16.mxu0 0
    %1633 = vmatpush1.bf16.msra.mxu0 0
    %1634 = vmatprep.subr.bf16.mxu0 0
    %1635 = vmatpush1.bf16.msra.mxu0 0
    %1636 = vmatprep.subr.bf16.mxu0 0
    %1637 = vmatpush1.bf16.msra.mxu0 0
    %1638 = vmatprep.subr.bf16.mxu0 0
    %1639 = vmatpush1.bf16.msra.mxu0 0
    %1640 = vmatprep.subr.bf16.mxu0 0
    %1641 = vmatpush1.bf16.msra.mxu0 0
    %1642 = vmatprep.subr.bf16.mxu0 0
    %1643 = vmatpush1.bf16.msra.mxu0 0
    %1644 = vmatprep.subr.bf16.mxu0 0
    %1645 = vmatpush1.bf16.msra.mxu0 0
    %1646 = vmatprep.subr.bf16.mxu0 0
    %1647 = vmatpush1.bf16.msra.mxu0 0
    %1648 = vmatprep.subr.bf16.mxu0 0
    %1649 = vmatpush1.bf16.msra.mxu0 0
    %1650 = vmatprep.subr.bf16.mxu0 0
    %1651 = vmatpush1.bf16.msra.mxu0 0
    %1652 = vmatprep.mubr.bf16.mxu0 0
    %1653 = vmatmul.mubr.bf16.gmra.mrb[0].mxu0 %v1618
    %v1654 = vpop.f32.mrb[0].mxu0
    %v1655 = vadd.f32 0.0, %v1654
    %v1656 = vpop.f32.mrb[0].mxu0
    %v1657 = vpop.f32.mrb[0].mxu0
    %v1658 = vadd.f32 0.0, %v1657
    %v1659 = vpop.f32.mrb[0].mxu0
    %1660 = vdwg.mxu0
    %v1661 = vmax.f32 %v1655, 0.0
    %v1662 = vmax.f32 %v1658, 0.0
    %v1663 = vpack.c.bf16 %v1662, %v1661
    %s1664 = scalar_lea.vmem %s12, 32
    %v1665 = vld [vmem:[%s1664] sm:$0xf]
    %v1666 = vld [vmem:[%s1664 + $0x4] sm:$0xf]
    %v1667 = vld [vmem:[%s1664 + $0x8] sm:$0xf]
    %v1668 = vld [vmem:[%s1664 + $0xc] sm:$0xf]
    %v1669 = vld [vmem:[%s1664 + $0x10] sm:$0xf]
    %v1670 = vld [vmem:[%s1664 + $0x14] sm:$0xf]
    %v1671 = vld [vmem:[%s1664 + $0x18] sm:$0xf]
    %v1672 = vld [vmem:[%s1664 + $0x1c] sm:$0xf]
    %v1681 = vunpack.c.l.b16 %v1665
    %v1682 = vunpack.c.l.b16 %v1666
    %v1683 = vunpack.c.l.b16 %v1667
    %v1684 = vunpack.c.l.b16 %v1668
    %v1685 = vunpack.c.l.b16 %v1669
    %v1686 = vunpack.c.l.b16 %v1670
    %v1687 = vunpack.c.l.b16 %v1671
    %v1688 = vunpack.c.l.b16 %v1672
    %v1689 = vpack.c.b16 %v1682, %v1681
    %v1690 = vpack.c.b16 %v1684, %v1683
    %v1691 = vpack.c.b16 %v1686, %v1685
    %v1692 = vpack.c.b16 %v1688, %v1687
    %v1698 = vsel %vm169, %v1663, 0
    %1700 = vmatprep.subr.bf16.mxu0 0
    %1701 = vmatpush1.bf16.msra.mxu0 %v1689
    %1702 = vmatprep.subr.bf16.mxu0 0
    %1703 = vmatpush1.bf16.msra.mxu0 %v1690
    %1704 = vmatprep.subr.bf16.mxu0 0
    %1705 = vmatpush1.bf16.msra.mxu0 %v1691
    %1706 = vmatprep.subr.bf16.mxu0 0
    %1707 = vmatpush1.bf16.msra.mxu0 %v1692
    %1708 = vmatprep.subr.bf16.mxu0 0
    %1709 = vmatpush1.bf16.msra.mxu0 0
    %1710 = vmatprep.subr.bf16.mxu0 0
    %1711 = vmatpush1.bf16.msra.mxu0 0
    %1712 = vmatprep.subr.bf16.mxu0 0
    %1713 = vmatpush1.bf16.msra.mxu0 0
    %1714 = vmatprep.subr.bf16.mxu0 0
    %1715 = vmatpush1.bf16.msra.mxu0 0
    %1716 = vmatprep.subr.bf16.mxu0 0
    %1717 = vmatpush1.bf16.msra.mxu0 0
    %1718 = vmatprep.subr.bf16.mxu0 0
    %1719 = vmatpush1.bf16.msra.mxu0 0
    %1720 = vmatprep.subr.bf16.mxu0 0
    %1721 = vmatpush1.bf16.msra.mxu0 0
    %1722 = vmatprep.subr.bf16.mxu0 0
    %1723 = vmatpush1.bf16.msra.mxu0 0
    %1724 = vmatprep.subr.bf16.mxu0 0
    %1725 = vmatpush1.bf16.msra.mxu0 0
    %1726 = vmatprep.subr.bf16.mxu0 0
    %1727 = vmatpush1.bf16.msra.mxu0 0
    %1728 = vmatprep.subr.bf16.mxu0 0
    %1729 = vmatpush1.bf16.msra.mxu0 0
    %1730 = vmatprep.subr.bf16.mxu0 0
    %1731 = vmatpush1.bf16.msra.mxu0 0
    %1732 = vmatprep.mubr.bf16.mxu0 0
    %1733 = vmatmul.mubr.bf16.gmra.mrb[0].mxu0 %v1698
    %v1734 = vpop.f32.mrb[0].mxu0
    %v1735 = vadd.f32 %v1593, %v1734
    %v1736 = vpop.f32.mrb[0].mxu0
    %v1737 = vpop.f32.mrb[0].mxu0
    %v1738 = vadd.f32 %v1596, %v1737
    %v1739 = vpop.f32.mrb[0].mxu0
    %1740 = vdwg.mxu0
    %v1741 = vpack.c.bf16 %v1738, %v1735
    %v1742 = vpack.c.bf16 %v1235, %v1232
    %s1743 = scalar_lea.vmem %s7, 32
    %v1744 = vld [vmem:[%s1743] sm:$0xf]
    %v1745 = vld [vmem:[%s1743 + $0x4] sm:$0xf]
    %v1746 = vld [vmem:[%s1743 + $0x8] sm:$0xf]
    %v1747 = vld [vmem:[%s1743 + $0xc] sm:$0xf]
    %v1752 = vunpack.c.l.b16 %v1744
    %v1753 = vunpack.c.l.b16 %v1745
    %v1754 = vunpack.c.l.b16 %v1746
    %v1755 = vunpack.c.l.b16 %v1747
    %v1756 = vpack.c.b16 %v1753, %v1752
    %v1757 = vpack.c.b16 %v1755, %v1754
    %v1761 = vsel %vm757, %v1741, 0
    %1763 = vmatprep.subr.bf16.mxu0 0
    %1764 = vmatpush1.bf16.msra.mxu0 %v1756
    %1765 = vmatprep.subr.bf16.mxu0 0
    %1766 = vmatpush1.bf16.msra.mxu0 %v1757
    %1767 = vmatprep.subr.bf16.mxu0 0
    %1768 = vmatpush1.bf16.msra.mxu0 0
    %1769 = vmatprep.subr.bf16.mxu0 0
    %1770 = vmatpush1.bf16.msra.mxu0 0
    %1771 = vmatprep.subr.bf16.mxu0 0
    %1772 = vmatpush1.bf16.msra.mxu0 0
    %1773 = vmatprep.subr.bf16.mxu0 0
    %1774 = vmatpush1.bf16.msra.mxu0 0
    %1775 = vmatprep.subr.bf16.mxu0 0
    %1776 = vmatpush1.bf16.msra.mxu0 0
    %1777 = vmatprep.subr.bf16.mxu0 0
    %1778 = vmatpush1.bf16.msra.mxu0 0
    %1779 = vmatprep.subr.bf16.mxu0 0
    %1780 = vmatpush1.bf16.msra.mxu0 0
    %1781 = vmatprep.subr.bf16.mxu0 0
    %1782 = vmatpush1.bf16.msra.mxu0 0
    %1783 = vmatprep.subr.bf16.mxu0 0
    %1784 = vmatpush1.bf16.msra.mxu0 0
    %1785 = vmatprep.subr.bf16.mxu0 0
    %1786 = vmatpush1.bf16.msra.mxu0 0
    %1787 = vmatprep.subr.bf16.mxu0 0
    %1788 = vmatpush1.bf16.msra.mxu0 0
    %1789 = vmatprep.subr.bf16.mxu0 0
    %1790 = vmatpush1.bf16.msra.mxu0 0
    %1791 = vmatprep.subr.bf16.mxu0 0
    %1792 = vmatpush1.bf16.msra.mxu0 0
    %1793 = vmatprep.subr.bf16.mxu0 0
    %1794 = vmatpush1.bf16.msra.mxu0 0
    %1795 = vmatprep.mubr.bf16.mxu0 0
    %1796 = vmatmul.mubr.bf16.gmra.mrb[0].mxu0 %v1761
    %v1797 = vpop.f32.mrb[0].mxu0
    %v1798 = vadd.f32 0.0, %v1797
    %v1799 = vpop.f32.mrb[0].mxu0
    %v1800 = vpop.f32.mrb[0].mxu0
    %v1801 = vadd.f32 0.0, %v1800
    %v1802 = vpop.f32.mrb[0].mxu0
    %1803 = vdwg.mxu0
    %s1804 = scalar_lea.vmem %s8, 32
    %v1805 = vld [vmem:[%s1804] sm:$0xf]
    %v1806 = vld [vmem:[%s1804 + $0x4] sm:$0xf]
    %v1807 = vld [vmem:[%s1804 + $0x8] sm:$0xf]
    %v1808 = vld [vmem:[%s1804 + $0xc] sm:$0xf]
    %v1813 = vunpack.c.l.b16 %v1805
    %v1814 = vunpack.c.l.b16 %v1806
    %v1815 = vunpack.c.l.b16 %v1807
    %v1816 = vunpack.c.l.b16 %v1808
    %v1817 = vpack.c.b16 %v1814, %v1813
    %v1818 = vpack.c.b16 %v1816, %v1815
    %v1822 = vsel %vm757, %v1742, 0
    %1824 = vmatprep.subr.bf16.mxu0 0
    %1825 = vmatpush1.bf16.msra.mxu0 %v1817
    %1826 = vmatprep.subr.bf16.mxu0 0
    %1827 = vmatpush1.bf16.msra.mxu0 %v1818
    %1828 = vmatprep.subr.bf16.mxu0 0
    %1829 = vmatpush1.bf16.msra.mxu0 0
    %1830 = vmatprep.subr.bf16.mxu0 0
    %1831 = vmatpush1.bf16.msra.mxu0 0
    %1832 = vmatprep.subr.bf16.mxu0 0
    %1833 = vmatpush1.bf16.msra.mxu0 0
    %1834 = vmatprep.subr.bf16.mxu0 0
    %1835 = vmatpush1.bf16.msra.mxu0 0
    %1836 = vmatprep.subr.bf16.mxu0 0
    %1837 = vmatpush1.bf16.msra.mxu0 0
    %1838 = vmatprep.subr.bf16.mxu0 0
    %1839 = vmatpush1.bf16.msra.mxu0 0
    %1840 = vmatprep.subr.bf16.mxu0 0
    %1841 = vmatpush1.bf16.msra.mxu0 0
    %1842 = vmatprep.subr.bf16.mxu0 0
    %1843 = vmatpush1.bf16.msra.mxu0 0
    %1844 = vmatprep.subr.bf16.mxu0 0
    %1845 = vmatpush1.bf16.msra.mxu0 0
    %1846 = vmatprep.subr.bf16.mxu0 0
    %1847 = vmatpush1.bf16.msra.mxu0 0
    %1848 = vmatprep.subr.bf16.mxu0 0
    %1849 = vmatpush1.bf16.msra.mxu0 0
    %1850 = vmatprep.subr.bf16.mxu0 0
    %1851 = vmatpush1.bf16.msra.mxu0 0
    %1852 = vmatprep.subr.bf16.mxu0 0
    %1853 = vmatpush1.bf16.msra.mxu0 0
    %1854 = vmatprep.subr.bf16.mxu0 0
    %1855 = vmatpush1.bf16.msra.mxu0 0
    %1856 = vmatprep.mubr.bf16.mxu0 0
    %1857 = vmatmul.mubr.bf16.gmra.mrb[0].mxu0 %v1822
    %v1858 = vpop.f32.mrb[0].mxu0
    %v1859 = vadd.f32 0.0, %v1858
    %v1860 = vpop.f32.mrb[0].mxu0
    %v1861 = vpop.f32.mrb[0].mxu0
    %v1862 = vadd.f32 0.0, %v1861
    %v1863 = vpop.f32.mrb[0].mxu0
    %1864 = vdwg.mxu0
    %s1865 = scalar_lea.vmem %s9, 32
    %v1866 = vld [vmem:[%s1865] sm:$0xf]
    %v1867 = vld [vmem:[%s1865 + $0x4] sm:$0xf]
    %v1868 = vld [vmem:[%s1865 + $0x8] sm:$0xf]
    %v1869 = vld [vmem:[%s1865 + $0xc] sm:$0xf]
    %v1874 = vunpack.c.l.b16 %v1866
    %v1875 = vunpack.c.l.b16 %v1867
    %v1876 = vunpack.c.l.b16 %v1868
    %v1877 = vunpack.c.l.b16 %v1869
    %v1878 = vpack.c.b16 %v1875, %v1874
    %v1879 = vpack.c.b16 %v1877, %v1876
    %1882 = vmatprep.subr.bf16.mxu0 0
    %1883 = vmatpush1.bf16.msra.mxu0 %v1878
    %1884 = vmatprep.subr.bf16.mxu0 0
    %1885 = vmatpush1.bf16.msra.mxu0 %v1879
    %1886 = vmatprep.subr.bf16.mxu0 0
    %1887 = vmatpush1.bf16.msra.mxu0 0
    %1888 = vmatprep.subr.bf16.mxu0 0
    %1889 = vmatpush1.bf16.msra.mxu0 0
    %1890 = vmatprep.subr.bf16.mxu0 0
    %1891 = vmatpush1.bf16.msra.mxu0 0
    %1892 = vmatprep.subr.bf16.mxu0 0
    %1893 = vmatpush1.bf16.msra.mxu0 0
    %1894 = vmatprep.subr.bf16.mxu0 0
    %1895 = vmatpush1.bf16.msra.mxu0 0
    %1896 = vmatprep.subr.bf16.mxu0 0
    %1897 = vmatpush1.bf16.msra.mxu0 0
    %1898 = vmatprep.subr.bf16.mxu0 0
    %1899 = vmatpush1.bf16.msra.mxu0 0
    %1900 = vmatprep.subr.bf16.mxu0 0
    %1901 = vmatpush1.bf16.msra.mxu0 0
    %1902 = vmatprep.subr.bf16.mxu0 0
    %1903 = vmatpush1.bf16.msra.mxu0 0
    %1904 = vmatprep.subr.bf16.mxu0 0
    %1905 = vmatpush1.bf16.msra.mxu0 0
    %1906 = vmatprep.subr.bf16.mxu0 0
    %1907 = vmatpush1.bf16.msra.mxu0 0
    %1908 = vmatprep.subr.bf16.mxu0 0
    %1909 = vmatpush1.bf16.msra.mxu0 0
    %1910 = vmatprep.subr.bf16.mxu0 0
    %1911 = vmatpush1.bf16.msra.mxu0 0
    %1912 = vmatprep.subr.bf16.mxu0 0
    %1913 = vmatpush1.bf16.msra.mxu0 0
    %1914 = vmatprep.mubr.bf16.mxu0 0
    %1915 = vmatmul.mubr.bf16.gmra.mrb[0].mxu0 %v1822
    %v1916 = vpop.f32.mrb[0].mxu0
    %v1917 = vadd.f32 0.0, %v1916
    %v1918 = vpop.f32.mrb[0].mxu0
    %v1919 = vpop.f32.mrb[0].mxu0
    %v1920 = vadd.f32 0.0, %v1919
    %v1921 = vpop.f32.mrb[0].mxu0
    %1922 = vdwg.mxu0
    %v1923 = vpack.c.bf16 %v1801, %v1798
    %v1924 = vpack.c.bf16 %v1862, %v1859
    %v1926 = vsel %vm757, %v1923, 0
    %v1929 = vsel %vm757, %v1924, 0
    %1931 = vmatprep.subr.bf16.mxu0 0
    %1932 = vmatpush1.bf16.xpose.msra.mxu0 %v1929
    %1933 = vmatprep.subr.bf16.mxu0 0
    %1934 = vmatpush1.bf16.xpose.msra.mxu0 0
    %1935 = vmatprep.subr.bf16.mxu0 0
    %1936 = vmatpush1.bf16.xpose.msra.mxu0 0
    %1937 = vmatprep.subr.bf16.mxu0 0
    %1938 = vmatpush1.bf16.xpose.msra.mxu0 0
    %1939 = vmatprep.subr.bf16.mxu0 0
    %1940 = vmatpush1.bf16.xpose.msra.mxu0 0
    %1941 = vmatprep.subr.bf16.mxu0 0
    %1942 = vmatpush1.bf16.xpose.msra.mxu0 0
    %1943 = vmatprep.subr.bf16.mxu0 0
    %1944 = vmatpush1.bf16.xpose.msra.mxu0 0
    %1945 = vmatprep.subr.bf16.mxu0 0
    %1946 = vmatpush1.bf16.xpose.msra.mxu0 0
    %1947 = vmatprep.subr.bf16.mxu0 0
    %1948 = vmatpush1.bf16.xpose.msra.mxu0 0
    %1949 = vmatprep.subr.bf16.mxu0 0
    %1950 = vmatpush1.bf16.xpose.msra.mxu0 0
    %1951 = vmatprep.subr.bf16.mxu0 0
    %1952 = vmatpush1.bf16.xpose.msra.mxu0 0
    %1953 = vmatprep.subr.bf16.mxu0 0
    %1954 = vmatpush1.bf16.xpose.msra.mxu0 0
    %1955 = vmatprep.subr.bf16.mxu0 0
    %1956 = vmatpush1.bf16.xpose.msra.mxu0 0
    %1957 = vmatprep.subr.bf16.mxu0 0
    %1958 = vmatpush1.bf16.xpose.msra.mxu0 0
    %1959 = vmatprep.subr.bf16.mxu0 0
    %1960 = vmatpush1.bf16.xpose.msra.mxu0 0
    %1961 = vmatprep.subr.bf16.mxu0 0
    %1962 = vmatpush1.bf16.xpose.msra.mxu0 0
    %1963 = vmatprep.mubr.bf16.mxu0 0
    %1964 = vmatmul.mubr.bf16.gmra.mrb[0].mxu0 %v1926
    %v1965 = vpop.f32.mrb[0].mxu0
    %v1966 = vadd.f32 0.0, %v1965
    %v1967 = vpop.f32.mrb[0].mxu0
    %v1968 = vpop.f32.mrb[0].mxu0
    %v1969 = vadd.f32 0.0, %v1968
    %v1970 = vpop.f32.mrb[0].mxu0
    %1971 = vdwg.mxu0
    %v1972 = vmul.f32 %v1966, 0.17677669
    %v1973 = vmul.f32 %v1969, 0.17677669
    %v1974 = vadd.f32 %v1972, %v738
    %v1975 = vadd.f32 %v1973, %v739
    %v1976 = vsel %vm362, %v1974, -inf
    %1977 = vmax.xlane.f32.xlu0 %v1976
    %v1978 = vpop.xlane.xlu0 %1977
    %v1979 = vsel %vm362, %v1975, -inf
    %1980 = vmax.xlane.f32.xlu0 %v1979
    %v1981 = vpop.xlane.xlu0 %1980
    %v1982 = vsub.f32 %v1974, %v1978
    %v1983 = vsub.f32 %v1975, %v1981
    %v1984 = vmul.f32 %v1982, 1.442695
    %v1985 = vpow.pop %v1984
    %v1986 = vmul.f32 %v1983, 1.442695
    %v1987 = vpow.pop %v1986
    %v1988 = vsel %vm362, %v1985, 0.0
    %1989 = vadd.xlane.f32.xlu0 %v1988
    %v1990 = vpop.xlane.xlu0 %1989
    %v1991 = vsel %vm362, %v1987, 0.0
    %1992 = vadd.xlane.f32.xlu0 %v1991
    %v1993 = vpop.xlane.xlu0 %1992
    %v1994 = vrcp.pop %v1990
    %v1995 = vmul.f32 %v1985, %v1994
    %v1996 = vrcp.pop %v1993
    %v1997 = vmul.f32 %v1987, %v1996
    %v1998 = vpack.c.bf16 %v1997, %v1995
    %v1999 = vpack.c.bf16 %v1920, %v1917
    %v2001 = vsel %vm362, %v1998, 0
    %2003 = vmatprep.subr.bf16.mxu0 0
    %2004 = vmatpush1.bf16.msra.mxu0 %v1999
    %2005 = vmatprep.subr.bf16.mxu0 0
    %2006 = vmatpush1.bf16.msra.mxu0 0
    %2007 = vmatprep.subr.bf16.mxu0 0
    %2008 = vmatpush1.bf16.msra.mxu0 0
    %2009 = vmatprep.subr.bf16.mxu0 0
    %2010 = vmatpush1.bf16.msra.mxu0 0
    %2011 = vmatprep.subr.bf16.mxu0 0
    %2012 = vmatpush1.bf16.msra.mxu0 0
    %2013 = vmatprep.subr.bf16.mxu0 0
    %2014 = vmatpush1.bf16.msra.mxu0 0
    %2015 = vmatprep.subr.bf16.mxu0 0
    %2016 = vmatpush1.bf16.msra.mxu0 0
    %2017 = vmatprep.subr.bf16.mxu0 0
    %2018 = vmatpush1.bf16.msra.mxu0 0
    %2019 = vmatprep.subr.bf16.mxu0 0
    %2020 = vmatpush1.bf16.msra.mxu0 0
    %2021 = vmatprep.subr.bf16.mxu0 0
    %2022 = vmatpush1.bf16.msra.mxu0 0
    %2023 = vmatprep.subr.bf16.mxu0 0
    %2024 = vmatpush1.bf16.msra.mxu0 0
    %2025 = vmatprep.subr.bf16.mxu0 0
    %2026 = vmatpush1.bf16.msra.mxu0 0
    %2027 = vmatprep.subr.bf16.mxu0 0
    %2028 = vmatpush1.bf16.msra.mxu0 0
    %2029 = vmatprep.subr.bf16.mxu0 0
    %2030 = vmatpush1.bf16.msra.mxu0 0
    %2031 = vmatprep.subr.bf16.mxu0 0
    %2032 = vmatpush1.bf16.msra.mxu0 0
    %2033 = vmatprep.subr.bf16.mxu0 0
    %2034 = vmatpush1.bf16.msra.mxu0 0
    %2035 = vmatprep.mubr.bf16.mxu0 0
    %2036 = vmatmul.mubr.bf16.gmra.mrb[0].mxu0 %v2001
    %v2037 = vpop.f32.mrb[0].mxu0
    %v2038 = vadd.f32 0.0, %v2037
    %v2039 = vpop.f32.mrb[0].mxu0
    %v2040 = vpop.f32.mrb[0].mxu0
    %v2041 = vadd.f32 0.0, %v2040
    %v2042 = vpop.f32.mrb[0].mxu0
    %2043 = vdwg.mxu0
    %v2044 = vpack.c.bf16 %v2041, %v2038
    %s2045 = scalar_lea.vmem %s10, 32
    %v2046 = vld [vmem:[%s2045] sm:$0xf]
    %v2047 = vld [vmem:[%s2045 + $0x4] sm:$0xf]
    %v2048 = vld [vmem:[%s2045 + $0x8] sm:$0xf]
    %v2049 = vld [vmem:[%s2045 + $0xc] sm:$0xf]
    %v2054 = vunpack.c.l.b16 %v2046
    %v2055 = vunpack.c.l.b16 %v2047
    %v2056 = vunpack.c.l.b16 %v2048
    %v2057 = vunpack.c.l.b16 %v2049
    %v2058 = vpack.c.b16 %v2055, %v2054
    %v2059 = vpack.c.b16 %v2057, %v2056
    %v2063 = vsel %vm757, %v2044, 0
    %2065 = vmatprep.subr.bf16.mxu0 0
    %2066 = vmatpush1.bf16.msra.mxu0 %v2058
    %2067 = vmatprep.subr.bf16.mxu0 0
    %2068 = vmatpush1.bf16.msra.mxu0 %v2059
    %2069 = vmatprep.subr.bf16.mxu0 0
    %2070 = vmatpush1.bf16.msra.mxu0 0
    %2071 = vmatprep.subr.bf16.mxu0 0
    %2072 = vmatpush1.bf16.msra.mxu0 0
    %2073 = vmatprep.subr.bf16.mxu0 0
    %2074 = vmatpush1.bf16.msra.mxu0 0
    %2075 = vmatprep.subr.bf16.mxu0 0
    %2076 = vmatpush1.bf16.msra.mxu0 0
    %2077 = vmatprep.subr.bf16.mxu0 0
    %2078 = vmatpush1.bf16.msra.mxu0 0
    %2079 = vmatprep.subr.bf16.mxu0 0
    %2080 = vmatpush1.bf16.msra.mxu0 0
    %2081 = vmatprep.subr.bf16.mxu0 0
    %2082 = vmatpush1.bf16.msra.mxu0 0
    %2083 = vmatprep.subr.bf16.mxu0 0
    %2084 = vmatpush1.bf16.msra.mxu0 0
    %2085 = vmatprep.subr.bf16.mxu0 0
    %2086 = vmatpush1.bf16.msra.mxu0 0
    %2087 = vmatprep.subr.bf16.mxu0 0
    %2088 = vmatpush1.bf16.msra.mxu0 0
    %2089 = vmatprep.subr.bf16.mxu0 0
    %2090 = vmatpush1.bf16.msra.mxu0 0
    %2091 = vmatprep.subr.bf16.mxu0 0
    %2092 = vmatpush1.bf16.msra.mxu0 0
    %2093 = vmatprep.subr.bf16.mxu0 0
    %2094 = vmatpush1.bf16.msra.mxu0 0
    %2095 = vmatprep.subr.bf16.mxu0 0
    %2096 = vmatpush1.bf16.msra.mxu0 0
    %2097 = vmatprep.mubr.bf16.mxu0 0
    %2098 = vmatmul.mubr.bf16.gmra.mrb[0].mxu0 %v2063
    %v2099 = vpop.f32.mrb[0].mxu0
    %v2100 = vadd.f32 %v1735, %v2099
    %v2101 = vpop.f32.mrb[0].mxu0
    %v2102 = vpop.f32.mrb[0].mxu0
    %v2103 = vadd.f32 %v1738, %v2102
    %v2104 = vpop.f32.mrb[0].mxu0
    %2105 = vdwg.mxu0
    %v2106 = vpack.c.bf16 %v2103, %v2100
    %s2107 = scalar_lea.vmem %s11, 32
    %v2108 = vld [vmem:[%s2107] sm:$0xf]
    %v2109 = vld [vmem:[%s2107 + $0x4] sm:$0xf]
    %v2110 = vld [vmem:[%s2107 + $0x8] sm:$0xf]
    %v2111 = vld [vmem:[%s2107 + $0xc] sm:$0xf]
    %v2116 = vunpack.c.l.b16 %v2108
    %v2117 = vunpack.c.l.b16 %v2109
    %v2118 = vunpack.c.l.b16 %v2110
    %v2119 = vunpack.c.l.b16 %v2111
    %v2120 = vpack.c.b16 %v2117, %v2116
    %v2121 = vpack.c.b16 %v2119, %v2118
    %v2125 = vsel %vm757, %v2106, 0
    %2127 = vmatprep.subr.bf16.mxu0 0
    %2128 = vmatpush1.bf16.msra.mxu0 %v2120
    %2129 = vmatprep.subr.bf16.mxu0 0
    %2130 = vmatpush1.bf16.msra.mxu0 %v2121
    %2131 = vmatprep.subr.bf16.mxu0 0
    %2132 = vmatpush1.bf16.msra.mxu0 0
    %2133 = vmatprep.subr.bf16.mxu0 0
    %2134 = vmatpush1.bf16.msra.mxu0 0
    %2135 = vmatprep.subr.bf16.mxu0 0
    %2136 = vmatpush1.bf16.msra.mxu0 0
    %2137 = vmatprep.subr.bf16.mxu0 0
    %2138 = vmatpush1.bf16.msra.mxu0 0
    %2139 = vmatprep.subr.bf16.mxu0 0
    %2140 = vmatpush1.bf16.msra.mxu0 0
    %2141 = vmatprep.subr.bf16.mxu0 0
    %2142 = vmatpush1.bf16.msra.mxu0 0
    %2143 = vmatprep.subr.bf16.mxu0 0
    %2144 = vmatpush1.bf16.msra.mxu0 0
    %2145 = vmatprep.subr.bf16.mxu0 0
    %2146 = vmatpush1.bf16.msra.mxu0 0
    %2147 = vmatprep.subr.bf16.mxu0 0
    %2148 = vmatpush1.bf16.msra.mxu0 0
    %2149 = vmatprep.subr.bf16.mxu0 0
    %2150 = vmatpush1.bf16.msra.mxu0 0
    %2151 = vmatprep.subr.bf16.mxu0 0
    %2152 = vmatpush1.bf16.msra.mxu0 0
    %2153 = vmatprep.subr.bf16.mxu0 0
    %2154 = vmatpush1.bf16.msra.mxu0 0
    %2155 = vmatprep.subr.bf16.mxu0 0
    %2156 = vmatpush1.bf16.msra.mxu0 0
    %2157 = vmatprep.subr.bf16.mxu0 0
    %2158 = vmatpush1.bf16.msra.mxu0 0
    %2159 = vmatprep.mubr.bf16.mxu0 0
    %2160 = vmatmul.mubr.bf16.gmra.mrb[0].mxu0 %v2125
    %v2161 = vpop.f32.mrb[0].mxu0
    %v2162 = vadd.f32 0.0, %v2161
    %v2163 = vpop.f32.mrb[0].mxu0
    %v2164 = vpop.f32.mrb[0].mxu0
    %v2165 = vadd.f32 0.0, %v2164
    %v2166 = vpop.f32.mrb[0].mxu0
    %2167 = vdwg.mxu0
    %v2168 = vmax.f32 %v2162, 0.0
    %v2169 = vmax.f32 %v2165, 0.0
    %v2170 = vpack.c.bf16 %v2169, %v2168
    %s2171 = scalar_lea.vmem %s12, 64
    %v2172 = vld [vmem:[%s2171] sm:$0xf]
    %v2173 = vld [vmem:[%s2171 + $0x4] sm:$0xf]
    %v2174 = vld [vmem:[%s2171 + $0x8] sm:$0xf]
    %v2175 = vld [vmem:[%s2171 + $0xc] sm:$0xf]
    %v2176 = vld [vmem:[%s2171 + $0x10] sm:$0xf]
    %v2177 = vld [vmem:[%s2171 + $0x14] sm:$0xf]
    %v2178 = vld [vmem:[%s2171 + $0x18] sm:$0xf]
    %v2179 = vld [vmem:[%s2171 + $0x1c] sm:$0xf]
    %v2188 = vunpack.c.l.b16 %v2172
    %v2189 = vunpack.c.l.b16 %v2173
    %v2190 = vunpack.c.l.b16 %v2174
    %v2191 = vunpack.c.l.b16 %v2175
    %v2192 = vunpack.c.l.b16 %v2176
    %v2193 = vunpack.c.l.b16 %v2177
    %v2194 = vunpack.c.l.b16 %v2178
    %v2195 = vunpack.c.l.b16 %v2179
    %v2196 = vpack.c.b16 %v2189, %v2188
    %v2197 = vpack.c.b16 %v2191, %v2190
    %v2198 = vpack.c.b16 %v2193, %v2192
    %v2199 = vpack.c.b16 %v2195, %v2194
    %v2205 = vsel %vm169, %v2170, 0
    %2207 = vmatprep.subr.bf16.mxu0 0
    %2208 = vmatpush1.bf16.msra.mxu0 %v2196
    %2209 = vmatprep.subr.bf16.mxu0 0
    %2210 = vmatpush1.bf16.msra.mxu0 %v2197
    %2211 = vmatprep.subr.bf16.mxu0 0
    %2212 = vmatpush1.bf16.msra.mxu0 %v2198
    %2213 = vmatprep.subr.bf16.mxu0 0
    %2214 = vmatpush1.bf16.msra.mxu0 %v2199
    %2215 = vmatprep.subr.bf16.mxu0 0
    %2216 = vmatpush1.bf16.msra.mxu0 0
    %2217 = vmatprep.subr.bf16.mxu0 0
    %2218 = vmatpush1.bf16.msra.mxu0 0
    %2219 = vmatprep.subr.bf16.mxu0 0
    %2220 = vmatpush1.bf16.msra.mxu0 0
    %2221 = vmatprep.subr.bf16.mxu0 0
    %2222 = vmatpush1.bf16.msra.mxu0 0
    %2223 = vmatprep.subr.bf16.mxu0 0
    %2224 = vmatpush1.bf16.msra.mxu0 0
    %2225 = vmatprep.subr.bf16.mxu0 0
    %2226 = vmatpush1.bf16.msra.mxu0 0
    %2227 = vmatprep.subr.bf16.mxu0 0
    %2228 = vmatpush1.bf16.msra.mxu0 0
    %2229 = vmatprep.subr.bf16.mxu0 0
    %2230 = vmatpush1.bf16.msra.mxu0 0
    %2231 = vmatprep.subr.bf16.mxu0 0
    %2232 = vmatpush1.bf16.msra.mxu0 0
    %2233 = vmatprep.subr.bf16.mxu0 0
    %2234 = vmatpush1.bf16.msra.mxu0 0
    %2235 = vmatprep.subr.bf16.mxu0 0
    %2236 = vmatpush1.bf16.msra.mxu0 0
    %2237 = vmatprep.subr.bf16.mxu0 0
    %2238 = vmatpush1.bf16.msra.mxu0 0
    %2239 = vmatprep.mubr.bf16.mxu0 0
    %2240 = vmatmul.mubr.bf16.gmra.mrb[0].mxu0 %v2205
    %v2241 = vpop.f32.mrb[0].mxu0
    %v2242 = vadd.f32 %v2100, %v2241
    %v2243 = vpop.f32.mrb[0].mxu0
    %v2244 = vpop.f32.mrb[0].mxu0
    %v2245 = vadd.f32 %v2103, %v2244
    %v2246 = vpop.f32.mrb[0].mxu0
    %2247 = vdwg.mxu0
    %2248 = vst.msk [vmem:[#allocation2] sm:$0xff] %vm757, %v2242
    %2249 = vst.msk [vmem:[#allocation2 + $0x8] sm:$0xff] %vm757, %v2245
    // Predicated region
    $region54: #{seq2seq_forward.1} parent=1 // pred_check
      _
    $region55: #{seq2seq_forward.1} parent=1 // pred_check_branch
      %2251 = sbr.rel (0) target = $region57
    $region56: #{seq2seq_forward.1} parent=1 // pred_region
      %s2253 = ssub.s32 256, 256
      %2254 = vsyncadd [#allocation3], %s2253
      %s2255 = sshll.u32 [#allocation2], 4
      %s2256 = int_to_ptr.vmem [resolvable:$true] %s2255
      %2261 = dma.vmem_to_hbm [thread:$0]  %s2256, 256, %s13, [#allocation3], 128, 128, 8
    $region57: #{seq2seq_forward.1} parent=1 // pred_fallthru
      _
    // Predicated region
    $region58: #{seq2seq_forward.1} parent=1 // pred_check
      _
    $region59: #{seq2seq_forward.1} parent=1 // pred_check_branch
      %2263 = sbr.rel (0) target = $region61
    $region60: #{seq2seq_forward.1} parent=1 // pred_region
      %2264 = dma.done [#allocation3], 256
    $region61: #{seq2seq_forward.1} parent=1 // pred_fallthru
      _
    %2265 = vsyncpa [#allocation3], 1

</llo_original>
